<compile_context>
chip_gen: v6e
topology: v6e:2x2x1
jax: 0.10.0
libtpu: 0.0.40
codegen_flags: <defaults>
</compile_context>

<pallas_src>
import jax
import jax.numpy as jnp
from jax.experimental import pallas as pl
from jax.experimental.pallas import tpu as pltpu

_L = 128  # distances per row: fully lane-dense input block

# Cody-Waite split of pi (single-precision constants) and 1/pi.
_PI_A = 3.140625
_PI_B = 0.0009670257568359375
_PI_C = 6.2771141529083251953e-07
_INV_PI = 0.3183098861837906715


def _sin_bounded(ax):
    """sin(ax) via reduce-by-pi + odd degree-11 polynomial (VALU only).

    Accurate to ~1e-7 absolute for |ax| up to ~1e6, which covers any sane
    radial-basis argument (n_rbf * pi * r / cutoff)."""
    n = jnp.floor(ax * _INV_PI + 0.5)            # nearest integer (f32-exact here)
    r = ax - n * _PI_A
    r = r - n * _PI_B
    r = r - n * _PI_C                            # r in ~[-pi/2, pi/2]
    r2 = r * r
    p = -2.5052108385441718775e-08               # odd Taylor/minimax coefficients
    p = p * r2 + 2.7557319223985890653e-06
    p = p * r2 + -1.9841269841269841253e-04
    p = p * r2 + 8.3333333333333332871e-03
    p = p * r2 + -1.6666666666666665741e-01
    s = r + r * (r2 * p)
    half = n * 0.5
    sign = 1.0 - 4.0 * (half - jnp.floor(half))  # (-1)**n
    return s * sign


def _bessel_rbf_kernel(x_ref, e3_ref, f_ref, o_ref):
    # x_ref : (bm, 128) f32 distances
    # e3_ref: (384, W)  bf16, three stacked copies of the one-hot expansion E,
    #                   E[l, l*n_rbf + k] = 1
    # f_ref : (1, W)    f32 tiled frequencies, f[0, l*n_rbf + k] = (k+1)*pi/cutoff
    # o_ref : (bm, W)   f32 lane-dense output block
    x = x_ref[...]

    # Exact bf16x3 decomposition of the f32 distances, stacked along K so the
    # lane expansion is a single MXU pass accumulating in f32 (bit-exact repeat).
    x_hi = x.astype(jnp.bfloat16)
    r1 = x - x_hi.astype(jnp.float32)
    x_mid = r1.astype(jnp.bfloat16)
    r2 = r1 - x_mid.astype(jnp.float32)
    x_lo = r2.astype(jnp.bfloat16)
    lhs = jnp.concatenate([x_hi, x_mid, x_lo], axis=1)                   # (bm, 384) bf16
    xw = jnp.dot(lhs, e3_ref[...], preferred_element_type=jnp.float32)   # (bm, W) f32

    # 1/r on the wide slab: EUP approx reciprocal + one Newton refinement.
    # Guarding xw == 0 covers both true zero distances and padded rows.
    xw_safe = jnp.where(xw == 0.0, jnp.float32(1.0), xw)
    inv = pl.reciprocal(xw_safe, approx=True)
    inv = inv * (2.0 - xw_safe * inv)

    ax = xw * f_ref[...]                                                 # broadcast (1, W)
    o_ref[...] = _sin_bounded(ax) * inv


def bessel_rbf(inputs: jax.Array, n_rbf: int, cutoff: float, *, block_rows=None) -> jax.Array:
    """Pallas BesselRBF forward. inputs: any shape; returns inputs.shape + (n_rbf,)."""
    orig_shape = inputs.shape
    x = jnp.asarray(inputs, jnp.float32).reshape(-1)
    n = x.shape[0]
    W = _L * n_rbf

    # Rows of 128 distances; keep >= 8 rows and a multiple of 8 so (bm, 128)
    # blocks are always legal.  Padding is only to 128-element granularity.
    rows = max(8, ((pl.cdiv(n, _L) + 7) // 8) * 8)
    pad = rows * _L - n
    if pad:
        # Zero padding rows produce sin(0)*1 = 0 and are sliced off below.
        x = jnp.pad(x, (0, pad))
    x2d = x.reshape(rows, _L)

    if block_rows is None:
        # ~3 MiB f32 output block: double-buffered in/out plus elementwise
        # intermediates stays inside the 32 MiB scoped-VMEM limit set below.
        block_rows = max(8, ((3 * 1024 * 1024) // (4 * W)) // 8 * 8)
    bm = min(block_rows, rows)
    if rows > 8:
        # Ensure >= 2 grid steps so the parallel axis splits across both
        # TensorCores on v7x (and partial last blocks stay non-empty).
        half = (rows + 1) // 2
        bm = min(bm, max(8, ((half + 7) // 8) * 8))
    grid = (pl.cdiv(rows, bm),)

    # Resident constants (constant index_map => fetched once, kept in VMEM).
    eye = jnp.eye(_L, dtype=jnp.float32)
    e = jnp.repeat(eye, n_rbf, axis=1)                                   # (128, W) one-hot
    e3 = jnp.concatenate([e, e, e], axis=0).astype(jnp.bfloat16)         # (384, W)
    freqs = jnp.arange(1, n_rbf + 1, dtype=jnp.float32) * jnp.pi / cutoff
    f_row = jnp.tile(freqs, _L).reshape(1, W)                            # (1, W)

    out = pl.pallas_call(
        _bessel_rbf_kernel,
        out_shape=jax.ShapeDtypeStruct((rows, W), jnp.float32),
        grid=grid,
        in_specs=[
            pl.BlockSpec((bm, _L), lambda i: (i, 0)),       # distance tile (lane dense)
            pl.BlockSpec((3 * _L, W), lambda i: (0, 0)),    # stacked one-hot (resident)
            pl.BlockSpec((1, W), lambda i: (0, 0)),         # tiled freqs (resident)
        ],
        out_specs=pl.BlockSpec((bm, W), lambda i: (i, 0)),
        compiler_params=pltpu.CompilerParams(
            dimension_semantics=("parallel",),
            vmem_limit_bytes=32 * 1024 * 1024,
        ),
    )(x2d, e3, f_row)

    # Free row-major view back to (N, n_rbf), then drop padding.
    out = out.reshape(rows * _L, n_rbf)
    if pad:
        # TODO(synk): when pad > 0 this slice is an extra HBM pass over the
        # output; arrange N % 128 == 0 upstream (or let a consumer fuse the
        # slice) if this op sits on the critical path.
        out = out[:n]
    return out.reshape(*orig_shape, n_rbf)


def _reference(inputs, n_rbf, cutoff):
    freqs = jnp.arange(1, n_rbf + 1, dtype=jnp.float32) * jnp.pi / cutoff
    ax = inputs[..., None] * freqs
    norm = jnp.where(inputs == 0.0, jnp.float32(1.0), inputs)
    return jnp.sin(ax) / norm[..., None]


if __name__ == "__main__":
    key = jax.random.PRNGKey(0)
    k1, k2 = jax.random.split(key)

    # Config 1: n_rbf = 8 (W = 1024), with exact zero distances.
    n_rbf, cutoff = 8, 5.0
    d = jax.random.uniform(k1, (2, 100), dtype=jnp.float32, maxval=cutoff)
    d = d.at[0, 0].set(0.0).at[1, 5].set(0.0)
    y = jax.block_until_ready(bessel_rbf(d, n_rbf, cutoff))
    y_ref = _reference(d, n_rbf, cutoff)
    assert y.shape == (2, 100, n_rbf)
    assert jnp.allclose(y, y_ref, atol=1e-5, rtol=1e-5), float(jnp.max(jnp.abs(y - y_ref)))

    # Config 2: n_rbf = 6 (W = 768), general path.
    n_rbf2, cutoff2 = 6, 4.0
    d2 = jax.random.uniform(k2, (3, 50), dtype=jnp.float32, maxval=cutoff2)
    d2 = d2.at[0, 0].set(0.0)
    y2 = jax.block_until_ready(bessel_rbf(d2, n_rbf2, cutoff2))
    y2_ref = _reference(d2, n_rbf2, cutoff2)
    assert y2.shape == (3, 50, n_rbf2)
    assert jnp.allclose(y2, y2_ref, atol=1e-5, rtol=1e-5), float(jnp.max(jnp.abs(y2 - y2_ref)))

    print("KERNEL_OK")
</pallas_src>

<mosaic_0001>
module attributes {stable_mosaic.version = 11 : i64} {
  func.func @_bessel_rbf_kernel(%arg0: i32, %arg1: memref<8x128xf32, #tpu.memory_space<vmem>>, %arg2: memref<384x1024xbf16, #tpu.memory_space<vmem>>, %arg3: memref<1x1024xf32, #tpu.memory_space<vmem>>, %arg4: memref<8x1024xf32, #tpu.memory_space<vmem>>) attributes {dimension_semantics = [#tpu.dimension_semantics<parallel>], iteration_bounds = array<i64: 1>, scalar_prefetch = 0 : i64, scratch_operands = 0 : i64, tpu.core_type = #tpu.core_type<tc>, window_params = [{transform_indices = @transform_0, window_bounds = array<i64: 8, 128>}, {pipeline_mode = #tpu.pipeline_mode<synchronous>, transform_indices = @transform_1, window_bounds = array<i64: 384, 1024>}, {pipeline_mode = #tpu.pipeline_mode<synchronous>, transform_indices = @transform_2, window_bounds = array<i64: 1, 1024>}, {transform_indices = @transform_3, window_bounds = array<i64: 8, 1024>}]} {
    %c0 = arith.constant 0 : index
    %c0_0 = arith.constant 0 : index
    %0 = vector.load %arg1[%c0, %c0_0] : memref<8x128xf32, #tpu.memory_space<vmem>>, vector<8x128xf32>
    %1 = arith.truncf %0 : vector<8x128xf32> to vector<8x128xbf16>
    %2 = arith.extf %1 : vector<8x128xbf16> to vector<8x128xf32>
    %3 = arith.subf %0, %2 : vector<8x128xf32>
    %4 = arith.truncf %3 : vector<8x128xf32> to vector<8x128xbf16>
    %5 = arith.extf %4 : vector<8x128xbf16> to vector<8x128xf32>
    %6 = arith.subf %3, %5 : vector<8x128xf32>
    %7 = arith.truncf %6 : vector<8x128xf32> to vector<8x128xbf16>
    %8 = tpu.concatenate %1, %4, %7 in 1 : vector<8x128xbf16>, vector<8x128xbf16>, vector<8x128xbf16> -> vector<8x384xbf16>
    %c0_1 = arith.constant 0 : index
    %c0_2 = arith.constant 0 : index
    %9 = vector.load %arg2[%c0_1, %c0_2] : memref<384x1024xbf16, #tpu.memory_space<vmem>>, vector<384x1024xbf16>
    %cst = arith.constant dense<0.000000e+00> : vector<8x1024xf32>
    %10 = tpu.matmul %8, %9, %cst {dimension_numbers = #tpu.dot_dimension_numbers<[1], [0], [0], [1], [0, 0, 1, 1], [], []>} : vector<8x384xbf16>, vector<384x1024xbf16>, vector<8x1024xf32> -> vector<8x1024xf32>
    %cst_3 = arith.constant 0.000000e+00 : f32
    %11 = vector.broadcast %cst_3 : f32 to vector<8x1024xf32>
    %12 = arith.cmpf oeq, %10, %11 : vector<8x1024xf32>
    %cst_4 = arith.constant 1.000000e+00 : f32
    %13 = vector.broadcast %cst_4 : f32 to vector<8x1024xf32>
    %14 = arith.select %12, %13, %10 : vector<8x1024xi1>, vector<8x1024xf32>
    %15 = tpu.reciprocal %14 {approx = true} : vector<8x1024xf32> -> vector<8x1024xf32>
    %16 = arith.mulf %14, %15 : vector<8x1024xf32>
    %cst_5 = arith.constant 2.000000e+00 : f32
    %17 = vector.broadcast %cst_5 : f32 to vector<8x1024xf32>
    %18 = arith.subf %17, %16 : vector<8x1024xf32>
    %19 = arith.mulf %15, %18 : vector<8x1024xf32>
    %c0_6 = arith.constant 0 : index
    %c0_7 = arith.constant 0 : index
    %20 = vector.load %arg3[%c0_6, %c0_7] : memref<1x1024xf32, #tpu.memory_space<vmem>>, vector<1x1024xf32>
    %21 = vector.broadcast %20 : vector<1x1024xf32> to vector<8x1024xf32>
    %22 = arith.mulf %10, %21 : vector<8x1024xf32>
    %cst_8 = arith.constant 0.318309873 : f32
    %23 = vector.broadcast %cst_8 : f32 to vector<8x1024xf32>
    %24 = arith.mulf %22, %23 : vector<8x1024xf32>
    %cst_9 = arith.constant 5.000000e-01 : f32
    %25 = vector.broadcast %cst_9 : f32 to vector<8x1024xf32>
    %26 = arith.addf %24, %25 : vector<8x1024xf32>
    %27 = math.floor %26 : vector<8x1024xf32>
    %cst_10 = arith.constant 3.140625 : f32
    %28 = vector.broadcast %cst_10 : f32 to vector<8x1024xf32>
    %29 = arith.mulf %27, %28 : vector<8x1024xf32>
    %30 = arith.subf %22, %29 : vector<8x1024xf32>
    %cst_11 = arith.constant 9.67025756E-4 : f32
    %31 = vector.broadcast %cst_11 : f32 to vector<8x1024xf32>
    %32 = arith.mulf %27, %31 : vector<8x1024xf32>
    %33 = arith.subf %30, %32 : vector<8x1024xf32>
    %cst_12 = arith.constant 6.27711415E-7 : f32
    %34 = vector.broadcast %cst_12 : f32 to vector<8x1024xf32>
    %35 = arith.mulf %27, %34 : vector<8x1024xf32>
    %36 = arith.subf %33, %35 : vector<8x1024xf32>
    %37 = arith.mulf %36, %36 : vector<8x1024xf32>
    %cst_13 = arith.constant -2.50521079E-8 : f32
    %38 = vector.broadcast %cst_13 : f32 to vector<8x1024xf32>
    %39 = arith.mulf %38, %37 : vector<8x1024xf32>
    %cst_14 = arith.constant 2.75573188E-6 : f32
    %40 = vector.broadcast %cst_14 : f32 to vector<8x1024xf32>
    %41 = arith.addf %39, %40 : vector<8x1024xf32>
    %42 = arith.mulf %41, %37 : vector<8x1024xf32>
    %cst_15 = arith.constant -1.98412701E-4 : f32
    %43 = vector.broadcast %cst_15 : f32 to vector<8x1024xf32>
    %44 = arith.addf %42, %43 : vector<8x1024xf32>
    %45 = arith.mulf %44, %37 : vector<8x1024xf32>
    %cst_16 = arith.constant 0.00833333377 : f32
    %46 = vector.broadcast %cst_16 : f32 to vector<8x1024xf32>
    %47 = arith.addf %45, %46 : vector<8x1024xf32>
    %48 = arith.mulf %47, %37 : vector<8x1024xf32>
    %cst_17 = arith.constant -0.166666672 : f32
    %49 = vector.broadcast %cst_17 : f32 to vector<8x1024xf32>
    %50 = arith.addf %48, %49 : vector<8x1024xf32>
    %51 = arith.mulf %37, %50 : vector<8x1024xf32>
    %52 = arith.mulf %36, %51 : vector<8x1024xf32>
    %53 = arith.addf %36, %52 : vector<8x1024xf32>
    %cst_18 = arith.constant 5.000000e-01 : f32
    %54 = vector.broadcast %cst_18 : f32 to vector<8x1024xf32>
    %55 = arith.mulf %27, %54 : vector<8x1024xf32>
    %56 = math.floor %55 : vector<8x1024xf32>
    %57 = arith.subf %55, %56 : vector<8x1024xf32>
    %cst_19 = arith.constant 4.000000e+00 : f32
    %58 = vector.broadcast %cst_19 : f32 to vector<8x1024xf32>
    %59 = arith.mulf %58, %57 : vector<8x1024xf32>
    %cst_20 = arith.constant 1.000000e+00 : f32
    %60 = vector.broadcast %cst_20 : f32 to vector<8x1024xf32>
    %61 = arith.subf %60, %59 : vector<8x1024xf32>
    %62 = arith.mulf %53, %61 : vector<8x1024xf32>
    %63 = arith.mulf %62, %19 : vector<8x1024xf32>
    %c0_21 = arith.constant 0 : index
    %c0_22 = arith.constant 0 : index
    %64 = vector.load %arg4[%c0_21, %c0_22] : memref<8x1024xf32, #tpu.memory_space<vmem>>, vector<8x1024xf32>
    tpu.vector_store %arg4[%c0_21, %c0_22], %63 {strides = array<i32>} : memref<8x1024xf32, #tpu.memory_space<vmem>>, vector<8x1024xf32>,
    return
  }
  func.func @transform_0(%arg0: i32) -> (i32, i32) {
    %c0_i32 = arith.constant 0 : i32
    %c0_i32_0 = arith.constant 0 : i32
    return %arg0, %c0_i32 : i32, i32
  }
  func.func @transform_1(%arg0: i32) -> (i32, i32) {
    %c0_i32 = arith.constant 0 : i32
    %c0_i32_0 = arith.constant 0 : i32
    %c0_i32_1 = arith.constant 0 : i32
    return %c0_i32, %c0_i32_0 : i32, i32
  }
  func.func @transform_2(%arg0: i32) -> (i32, i32) {
    %c0_i32 = arith.constant 0 : i32
    %c0_i32_0 = arith.constant 0 : i32
    %c0_i32_1 = arith.constant 0 : i32
    return %c0_i32, %c0_i32_0 : i32, i32
  }
  func.func @transform_3(%arg0: i32) -> (i32, i32) {
    %c0_i32 = arith.constant 0 : i32
    %c0_i32_0 = arith.constant 0 : i32
    return %arg0, %c0_i32 : i32, i32
  }
}

</mosaic_0001>

<llo_original>
// kernel: tpu_custom_call.1
$region0: #{tpu_custom_call.1}
  #allocation0 [shape = 'u32[]', space=smem, size = 0x4, offset = 0x4, fixed_abs, tag = 'smem constant byte address 0x4 - core index']
  #allocation1 [shape = 'u32[144,128]{1,0:T(1,128)}', space=vmem, size = 0x12000, scoped, tag = 'internal scratch']
  %s0 = inlined_call_operand.hbm [shape: f32[8,128], index: 0, kind: input, shape index: {}]
  %s1 = inlined_call_operand.hbm [shape: bf16[384,1024], index: 1, kind: input, shape index: {}]
  %s2 = inlined_call_operand.hbm [shape: f32[1,1024], index: 2, kind: input, shape index: {}]
  %s3 = inlined_call_operand.hbm [shape: f32[8,1024], index: 3, kind: output, shape index: {}]
  %s4 = sld [smem:[#allocation0]]
  $region34: #{tpu_custom_call.1} parent=0
    _
  %s6 = ssub.s32 1, %s4
  %s7 = scalar_select 0, %s6, %s4
  $region1: #{tpu_custom_call.1} parent=0
    #allocation2 [shape = 'u8[4096]{0}', space=vmem, size = 0x1000, scoped, tag = 'input window, operand 0, single buffered']
    #allocation3 [shape = 's32[1]{0}', space=sflag, size = 0x4, scoped, tag = 'scoped memory for tpu_custom_call.1']
    #allocation4 [shape = 's32[1]{0}', space=sflag, size = 0x4, scoped, tag = 'scoped memory for tpu_custom_call.1']
    #allocation5 [shape = 'u8[786432]{0}', space=vmem, size = 0xc0000, scoped, tag = 'input window, operand 1, single buffered']
    #allocation6 [shape = 's32[1]{0}', space=sflag, size = 0x4, scoped, tag = 'scoped memory for tpu_custom_call.1']
    #allocation7 [shape = 'u8[4096]{0}', space=vmem, size = 0x1000, scoped, tag = 'input window, operand 2, single buffered']
    #allocation8 [shape = 'u8[32768]{0}', space=vmem, size = 0x8000, scoped, tag = 'output window, operand 0, single buffered']
    %8 = vsyncpa [#allocation3], 0
    %9 = vsyncpa [#allocation6], 0
    %10 = vsyncpa [#allocation4], 0
    // Predicated region
    $region2: #{tpu_custom_call.1} parent=1 // pred_check
      _
    $region3: #{tpu_custom_call.1} parent=1 // pred_check_branch
      %12 = sbr.rel (0) target = $region5
    $region4: #{tpu_custom_call.1} parent=1 // pred_region
      %s14 = ssub.s32 128, 128
      %15 = vsyncadd [#allocation3], %s14
      %s17 = sshll.u32 [#allocation2], 4
      %s18 = int_to_ptr.vmem [resolvable:$true] %s17
      %20 = dma.hbm_to_vmem [thread:$0]  %s0, 128, %s18, [#allocation3]
    $region5: #{tpu_custom_call.1} parent=1 // pred_fallthru
      _
    // Predicated region
    $region6: #{tpu_custom_call.1} parent=1 // pred_check
      _
    $region7: #{tpu_custom_call.1} parent=1 // pred_check_branch
      %22 = sbr.rel (0) target = $region9
    $region8: #{tpu_custom_call.1} parent=1 // pred_region
      %s24 = ssub.s32 24576, 24576
      %25 = vsyncadd [#allocation6], %s24
      %s26 = sshll.u32 [#allocation5], 4
      %s27 = int_to_ptr.vmem [resolvable:$true] %s26
      %32 = dma.hbm_to_vmem [thread:$0]  %s1, 24576, %s27, [#allocation6], 512, 512, 32
    $region9: #{tpu_custom_call.1} parent=1 // pred_fallthru
      _
    // Predicated region
    $region10: #{tpu_custom_call.1} parent=1 // pred_check
      _
    $region11: #{tpu_custom_call.1} parent=1 // pred_check_branch
      %34 = sbr.rel (0) target = $region13
    $region12: #{tpu_custom_call.1} parent=1 // pred_region
      %s36 = ssub.s32 128, 128
      %37 = vsyncadd [#allocation6], %s36
      %s39 = sshll.u32 [#allocation7], 4
      %s40 = int_to_ptr.vmem [resolvable:$true] %s39
      %42 = dma.hbm_to_vmem [thread:$0]  %s2, 128, %s40, [#allocation6]
    $region13: #{tpu_custom_call.1} parent=1 // pred_fallthru
      _
    // Predicated region
    $region14: #{tpu_custom_call.1} parent=1 // pred_check
      _
    $region15: #{tpu_custom_call.1} parent=1 // pred_check_branch
      %44 = sbr.rel (0) target = $region17
    $region16: #{tpu_custom_call.1} parent=1 // pred_region
      %45 = dma.done [#allocation3], 128
    $region17: #{tpu_custom_call.1} parent=1 // pred_fallthru
      _
    // Predicated region
    $region18: #{tpu_custom_call.1} parent=1 // pred_check
      _
    $region19: #{tpu_custom_call.1} parent=1 // pred_check_branch
      %47 = sbr.rel (0) target = $region21
    $region20: #{tpu_custom_call.1} parent=1 // pred_region
      %48 = dma.done [#allocation6], 24576
    $region21: #{tpu_custom_call.1} parent=1 // pred_fallthru
      _
    // Predicated region
    $region22: #{tpu_custom_call.1} parent=1 // pred_check
      _
    $region23: #{tpu_custom_call.1} parent=1 // pred_check_branch
      %50 = sbr.rel (0) target = $region25
    $region24: #{tpu_custom_call.1} parent=1 // pred_region
      %51 = dma.done [#allocation6], 128
    $region25: #{tpu_custom_call.1} parent=1 // pred_fallthru
      _
    %v53 = vld [vmem:[#allocation2] sm:$0xff]
    %v54 = vpack.c.bf16 %v53, %v53
    %v55 = vunpack.c.l.bf16 %v54
    %v56 = vsub.f32 %v53, %v55
    %v57 = vpack.c.bf16 %v56, %v56
    %v58 = vunpack.c.l.bf16 %v57
    %v59 = vsub.f32 %v56, %v58
    %v60 = vpack.c.bf16 %v59, %v59
    %v61 = vld [vmem:[#allocation5] sm:$0xff]
    %v62 = vld [vmem:[#allocation5 + $0x8] sm:$0xff]
    %v63 = vld [vmem:[#allocation5 + $0x10] sm:$0xff]
    %v64 = vld [vmem:[#allocation5 + $0x18] sm:$0xff]
    %v65 = vld [vmem:[#allocation5 + $0x20] sm:$0xff]
    %v66 = vld [vmem:[#allocation5 + $0x28] sm:$0xff]
    %v67 = vld [vmem:[#allocation5 + $0x30] sm:$0xff]
    %v68 = vld [vmem:[#allocation5 + $0x38] sm:$0xff]
    %v69 = vld [vmem:[#allocation5 + $0x40] sm:$0xff]
    %v70 = vld [vmem:[#allocation5 + $0x48] sm:$0xff]
    %v71 = vld [vmem:[#allocation5 + $0x50] sm:$0xff]
    %v72 = vld [vmem:[#allocation5 + $0x58] sm:$0xff]
    %v73 = vld [vmem:[#allocation5 + $0x60] sm:$0xff]
    %v74 = vld [vmem:[#allocation5 + $0x68] sm:$0xff]
    %v75 = vld [vmem:[#allocation5 + $0x70] sm:$0xff]
    %v76 = vld [vmem:[#allocation5 + $0x78] sm:$0xff]
    %v77 = vld [vmem:[#allocation5 + $0x80] sm:$0xff]
    %v78 = vld [vmem:[#allocation5 + $0x88] sm:$0xff]
    %v79 = vld [vmem:[#allocation5 + $0x90] sm:$0xff]
    %v80 = vld [vmem:[#allocation5 + $0x98] sm:$0xff]
    %v81 = vld [vmem:[#allocation5 + $0xa0] sm:$0xff]
    %v82 = vld [vmem:[#allocation5 + $0xa8] sm:$0xff]
    %v83 = vld [vmem:[#allocation5 + $0xb0] sm:$0xff]
    %v84 = vld [vmem:[#allocation5 + $0xb8] sm:$0xff]
    %v85 = vld [vmem:[#allocation5 + $0xc0] sm:$0xff]
    %v86 = vld [vmem:[#allocation5 + $0xc8] sm:$0xff]
    %v87 = vld [vmem:[#allocation5 + $0xd0] sm:$0xff]
    %v88 = vld [vmem:[#allocation5 + $0xd8] sm:$0xff]
    %v89 = vld [vmem:[#allocation5 + $0xe0] sm:$0xff]
    %v90 = vld [vmem:[#allocation5 + $0xe8] sm:$0xff]
    %v91 = vld [vmem:[#allocation5 + $0xf0] sm:$0xff]
    %v92 = vld [vmem:[#allocation5 + $0xf8] sm:$0xff]
    %v93 = vld [vmem:[#allocation5 + $0x100] sm:$0xff]
    %v94 = vld [vmem:[#allocation5 + $0x108] sm:$0xff]
    %v95 = vld [vmem:[#allocation5 + $0x110] sm:$0xff]
    %v96 = vld [vmem:[#allocation5 + $0x118] sm:$0xff]
    %v97 = vld [vmem:[#allocation5 + $0x120] sm:$0xff]
    %v98 = vld [vmem:[#allocation5 + $0x128] sm:$0xff]
    %v99 = vld [vmem:[#allocation5 + $0x130] sm:$0xff]
    %v100 = vld [vmem:[#allocation5 + $0x138] sm:$0xff]
    %v101 = vld [vmem:[#allocation5 + $0x140] sm:$0xff]
    %v102 = vld [vmem:[#allocation5 + $0x148] sm:$0xff]
    %v103 = vld [vmem:[#allocation5 + $0x150] sm:$0xff]
    %v104 = vld [vmem:[#allocation5 + $0x158] sm:$0xff]
    %v105 = vld [vmem:[#allocation5 + $0x160] sm:$0xff]
    %v106 = vld [vmem:[#allocation5 + $0x168] sm:$0xff]
    %v107 = vld [vmem:[#allocation5 + $0x170] sm:$0xff]
    %v108 = vld [vmem:[#allocation5 + $0x178] sm:$0xff]
    %v109 = vld [vmem:[#allocation5 + $0x180] sm:$0xff]
    %v110 = vld [vmem:[#allocation5 + $0x188] sm:$0xff]
    %v111 = vld [vmem:[#allocation5 + $0x190] sm:$0xff]
    %v112 = vld [vmem:[#allocation5 + $0x198] sm:$0xff]
    %v113 = vld [vmem:[#allocation5 + $0x1a0] sm:$0xff]
    %v114 = vld [vmem:[#allocation5 + $0x1a8] sm:$0xff]
    %v115 = vld [vmem:[#allocation5 + $0x1b0] sm:$0xff]
    %v116 = vld [vmem:[#allocation5 + $0x1b8] sm:$0xff]
    %v117 = vld [vmem:[#allocation5 + $0x1c0] sm:$0xff]
    %v118 = vld [vmem:[#allocation5 + $0x1c8] sm:$0xff]
    %v119 = vld [vmem:[#allocation5 + $0x1d0] sm:$0xff]
    %v120 = vld [vmem:[#allocation5 + $0x1d8] sm:$0xff]
    %v121 = vld [vmem:[#allocation5 + $0x1e0] sm:$0xff]
    %v122 = vld [vmem:[#allocation5 + $0x1e8] sm:$0xff]
    %v123 = vld [vmem:[#allocation5 + $0x1f0] sm:$0xff]
    %v124 = vld [vmem:[#allocation5 + $0x1f8] sm:$0xff]
    %v125 = vld [vmem:[#allocation5 + $0x200] sm:$0xff]
    %v126 = vld [vmem:[#allocation5 + $0x208] sm:$0xff]
    %v127 = vld [vmem:[#allocation5 + $0x210] sm:$0xff]
    %v128 = vld [vmem:[#allocation5 + $0x218] sm:$0xff]
    %v129 = vld [vmem:[#allocation5 + $0x220] sm:$0xff]
    %v130 = vld [vmem:[#allocation5 + $0x228] sm:$0xff]
    %v131 = vld [vmem:[#allocation5 + $0x230] sm:$0xff]
    %v132 = vld [vmem:[#allocation5 + $0x238] sm:$0xff]
    %v133 = vld [vmem:[#allocation5 + $0x240] sm:$0xff]
    %v134 = vld [vmem:[#allocation5 + $0x248] sm:$0xff]
    %v135 = vld [vmem:[#allocation5 + $0x250] sm:$0xff]
    %v136 = vld [vmem:[#allocation5 + $0x258] sm:$0xff]
    %v137 = vld [vmem:[#allocation5 + $0x260] sm:$0xff]
    %v138 = vld [vmem:[#allocation5 + $0x268] sm:$0xff]
    %v139 = vld [vmem:[#allocation5 + $0x270] sm:$0xff]
    %v140 = vld [vmem:[#allocation5 + $0x278] sm:$0xff]
    %v141 = vld [vmem:[#allocation5 + $0x280] sm:$0xff]
    %v142 = vld [vmem:[#allocation5 + $0x288] sm:$0xff]
    %v143 = vld [vmem:[#allocation5 + $0x290] sm:$0xff]
    %v144 = vld [vmem:[#allocation5 + $0x298] sm:$0xff]
    %v145 = vld [vmem:[#allocation5 + $0x2a0] sm:$0xff]
    %v146 = vld [vmem:[#allocation5 + $0x2a8] sm:$0xff]
    %v147 = vld [vmem:[#allocation5 + $0x2b0] sm:$0xff]
    %v148 = vld [vmem:[#allocation5 + $0x2b8] sm:$0xff]
    %v149 = vld [vmem:[#allocation5 + $0x2c0] sm:$0xff]
    %v150 = vld [vmem:[#allocation5 + $0x2c8] sm:$0xff]
    %v151 = vld [vmem:[#allocation5 + $0x2d0] sm:$0xff]
    %v152 = vld [vmem:[#allocation5 + $0x2d8] sm:$0xff]
    %v153 = vld [vmem:[#allocation5 + $0x2e0] sm:$0xff]
    %v154 = vld [vmem:[#allocation5 + $0x2e8] sm:$0xff]
    %v155 = vld [vmem:[#allocation5 + $0x2f0] sm:$0xff]
    %v156 = vld [vmem:[#allocation5 + $0x2f8] sm:$0xff]
    %v157 = vld [vmem:[#allocation5 + $0x300] sm:$0xff]
    %v158 = vld [vmem:[#allocation5 + $0x308] sm:$0xff]
    %v159 = vld [vmem:[#allocation5 + $0x310] sm:$0xff]
    %v160 = vld [vmem:[#allocation5 + $0x318] sm:$0xff]
    %v161 = vld [vmem:[#allocation5 + $0x320] sm:$0xff]
    %v162 = vld [vmem:[#allocation5 + $0x328] sm:$0xff]
    %v163 = vld [vmem:[#allocation5 + $0x330] sm:$0xff]
    %v164 = vld [vmem:[#allocation5 + $0x338] sm:$0xff]
    %v165 = vld [vmem:[#allocation5 + $0x340] sm:$0xff]
    %v166 = vld [vmem:[#allocation5 + $0x348] sm:$0xff]
    %v167 = vld [vmem:[#allocation5 + $0x350] sm:$0xff]
    %v168 = vld [vmem:[#allocation5 + $0x358] sm:$0xff]
    %v169 = vld [vmem:[#allocation5 + $0x360] sm:$0xff]
    %v170 = vld [vmem:[#allocation5 + $0x368] sm:$0xff]
    %v171 = vld [vmem:[#allocation5 + $0x370] sm:$0xff]
    %v172 = vld [vmem:[#allocation5 + $0x378] sm:$0xff]
    %v173 = vld [vmem:[#allocation5 + $0x380] sm:$0xff]
    %v174 = vld [vmem:[#allocation5 + $0x388] sm:$0xff]
    %v175 = vld [vmem:[#allocation5 + $0x390] sm:$0xff]
    %v176 = vld [vmem:[#allocation5 + $0x398] sm:$0xff]
    %v177 = vld [vmem:[#allocation5 + $0x3a0] sm:$0xff]
    %v178 = vld [vmem:[#allocation5 + $0x3a8] sm:$0xff]
    %v179 = vld [vmem:[#allocation5 + $0x3b0] sm:$0xff]
    %v180 = vld [vmem:[#allocation5 + $0x3b8] sm:$0xff]
    %v181 = vld [vmem:[#allocation5 + $0x3c0] sm:$0xff]
    %v182 = vld [vmem:[#allocation5 + $0x3c8] sm:$0xff]
    %v183 = vld [vmem:[#allocation5 + $0x3d0] sm:$0xff]
    %v184 = vld [vmem:[#allocation5 + $0x3d8] sm:$0xff]
    %v185 = vld [vmem:[#allocation5 + $0x3e0] sm:$0xff]
    %v186 = vld [vmem:[#allocation5 + $0x3e8] sm:$0xff]
    %v187 = vld [vmem:[#allocation5 + $0x3f0] sm:$0xff]
    %v188 = vld [vmem:[#allocation5 + $0x3f8] sm:$0xff]
    %v189 = vld [vmem:[#allocation5 + $0x400] sm:$0xff]
    %v190 = vld [vmem:[#allocation5 + $0x408] sm:$0xff]
    %v191 = vld [vmem:[#allocation5 + $0x410] sm:$0xff]
    %v192 = vld [vmem:[#allocation5 + $0x418] sm:$0xff]
    %v193 = vld [vmem:[#allocation5 + $0x420] sm:$0xff]
    %v194 = vld [vmem:[#allocation5 + $0x428] sm:$0xff]
    %v195 = vld [vmem:[#allocation5 + $0x430] sm:$0xff]
    %v196 = vld [vmem:[#allocation5 + $0x438] sm:$0xff]
    %v197 = vld [vmem:[#allocation5 + $0x440] sm:$0xff]
    %v198 = vld [vmem:[#allocation5 + $0x448] sm:$0xff]
    %v199 = vld [vmem:[#allocation5 + $0x450] sm:$0xff]
    %v200 = vld [vmem:[#allocation5 + $0x458] sm:$0xff]
    %v201 = vld [vmem:[#allocation5 + $0x460] sm:$0xff]
    %v202 = vld [vmem:[#allocation5 + $0x468] sm:$0xff]
    %v203 = vld [vmem:[#allocation5 + $0x470] sm:$0xff]
    %v204 = vld [vmem:[#allocation5 + $0x478] sm:$0xff]
    %v205 = vld [vmem:[#allocation5 + $0x480] sm:$0xff]
    %v206 = vld [vmem:[#allocation5 + $0x488] sm:$0xff]
    %v207 = vld [vmem:[#allocation5 + $0x490] sm:$0xff]
    %v208 = vld [vmem:[#allocation5 + $0x498] sm:$0xff]
    %v209 = vld [vmem:[#allocation5 + $0x4a0] sm:$0xff]
    %v210 = vld [vmem:[#allocation5 + $0x4a8] sm:$0xff]
    %v211 = vld [vmem:[#allocation5 + $0x4b0] sm:$0xff]
    %v212 = vld [vmem:[#allocation5 + $0x4b8] sm:$0xff]
    %v213 = vld [vmem:[#allocation5 + $0x4c0] sm:$0xff]
    %v214 = vld [vmem:[#allocation5 + $0x4c8] sm:$0xff]
    %v215 = vld [vmem:[#allocation5 + $0x4d0] sm:$0xff]
    %v216 = vld [vmem:[#allocation5 + $0x4d8] sm:$0xff]
    %v217 = vld [vmem:[#allocation5 + $0x4e0] sm:$0xff]
    %v218 = vld [vmem:[#allocation5 + $0x4e8] sm:$0xff]
    %v219 = vld [vmem:[#allocation5 + $0x4f0] sm:$0xff]
    %v220 = vld [vmem:[#allocation5 + $0x4f8] sm:$0xff]
    %v221 = vld [vmem:[#allocation5 + $0x500] sm:$0xff]
    %v222 = vld [vmem:[#allocation5 + $0x508] sm:$0xff]
    %v223 = vld [vmem:[#allocation5 + $0x510] sm:$0xff]
    %v224 = vld [vmem:[#allocation5 + $0x518] sm:$0xff]
    %v225 = vld [vmem:[#allocation5 + $0x520] sm:$0xff]
    %v226 = vld [vmem:[#allocation5 + $0x528] sm:$0xff]
    %v227 = vld [vmem:[#allocation5 + $0x530] sm:$0xff]
    %v228 = vld [vmem:[#allocation5 + $0x538] sm:$0xff]
    %v229 = vld [vmem:[#allocation5 + $0x540] sm:$0xff]
    %v230 = vld [vmem:[#allocation5 + $0x548] sm:$0xff]
    %v231 = vld [vmem:[#allocation5 + $0x550] sm:$0xff]
    %v232 = vld [vmem:[#allocation5 + $0x558] sm:$0xff]
    %v233 = vld [vmem:[#allocation5 + $0x560] sm:$0xff]
    %v234 = vld [vmem:[#allocation5 + $0x568] sm:$0xff]
    %v235 = vld [vmem:[#allocation5 + $0x570] sm:$0xff]
    %v236 = vld [vmem:[#allocation5 + $0x578] sm:$0xff]
    %v237 = vld [vmem:[#allocation5 + $0x580] sm:$0xff]
    %v238 = vld [vmem:[#allocation5 + $0x588] sm:$0xff]
    %v239 = vld [vmem:[#allocation5 + $0x590] sm:$0xff]
    %v240 = vld [vmem:[#allocation5 + $0x598] sm:$0xff]
    %v241 = vld [vmem:[#allocation5 + $0x5a0] sm:$0xff]
    %v242 = vld [vmem:[#allocation5 + $0x5a8] sm:$0xff]
    %v243 = vld [vmem:[#allocation5 + $0x5b0] sm:$0xff]
    %v244 = vld [vmem:[#allocation5 + $0x5b8] sm:$0xff]
    %v245 = vld [vmem:[#allocation5 + $0x5c0] sm:$0xff]
    %v246 = vld [vmem:[#allocation5 + $0x5c8] sm:$0xff]
    %v247 = vld [vmem:[#allocation5 + $0x5d0] sm:$0xff]
    %v248 = vld [vmem:[#allocation5 + $0x5d8] sm:$0xff]
    %v249 = vld [vmem:[#allocation5 + $0x5e0] sm:$0xff]
    %v250 = vld [vmem:[#allocation5 + $0x5e8] sm:$0xff]
    %v251 = vld [vmem:[#allocation5 + $0x5f0] sm:$0xff]
    %v252 = vld [vmem:[#allocation5 + $0x5f8] sm:$0xff]
    %v445 = vunpack.c.l.b16 %v61
    %v446 = vunpack.c.h.b16 %v61
    %v447 = vunpack.c.l.b16 %v62
    %v448 = vunpack.c.h.b16 %v62
    %v449 = vunpack.c.l.b16 %v63
    %v450 = vunpack.c.h.b16 %v63
    %v451 = vunpack.c.l.b16 %v64
    %v452 = vunpack.c.h.b16 %v64
    %v453 = vunpack.c.l.b16 %v65
    %v454 = vunpack.c.h.b16 %v65
    %v455 = vunpack.c.l.b16 %v66
    %v456 = vunpack.c.h.b16 %v66
    %v457 = vunpack.c.l.b16 %v67
    %v458 = vunpack.c.h.b16 %v67
    %v459 = vunpack.c.l.b16 %v68
    %v460 = vunpack.c.h.b16 %v68
    %v461 = vunpack.c.l.b16 %v69
    %v462 = vunpack.c.h.b16 %v69
    %v463 = vunpack.c.l.b16 %v70
    %v464 = vunpack.c.h.b16 %v70
    %v465 = vunpack.c.l.b16 %v71
    %v466 = vunpack.c.h.b16 %v71
    %v467 = vunpack.c.l.b16 %v72
    %v468 = vunpack.c.h.b16 %v72
    %v469 = vunpack.c.l.b16 %v73
    %v470 = vunpack.c.h.b16 %v73
    %v471 = vunpack.c.l.b16 %v74
    %v472 = vunpack.c.h.b16 %v74
    %v473 = vunpack.c.l.b16 %v75
    %v474 = vunpack.c.h.b16 %v75
    %v475 = vunpack.c.l.b16 %v76
    %v476 = vunpack.c.h.b16 %v76
    %v477 = vunpack.c.l.b16 %v77
    %v478 = vunpack.c.h.b16 %v77
    %v479 = vunpack.c.l.b16 %v78
    %v480 = vunpack.c.h.b16 %v78
    %v481 = vunpack.c.l.b16 %v79
    %v482 = vunpack.c.h.b16 %v79
    %v483 = vunpack.c.l.b16 %v80
    %v484 = vunpack.c.h.b16 %v80
    %v485 = vunpack.c.l.b16 %v81
    %v486 = vunpack.c.h.b16 %v81
    %v487 = vunpack.c.l.b16 %v82
    %v488 = vunpack.c.h.b16 %v82
    %v489 = vunpack.c.l.b16 %v83
    %v490 = vunpack.c.h.b16 %v83
    %v491 = vunpack.c.l.b16 %v84
    %v492 = vunpack.c.h.b16 %v84
    %v493 = vunpack.c.l.b16 %v85
    %v494 = vunpack.c.h.b16 %v85
    %v495 = vunpack.c.l.b16 %v86
    %v496 = vunpack.c.h.b16 %v86
    %v497 = vunpack.c.l.b16 %v87
    %v498 = vunpack.c.h.b16 %v87
    %v499 = vunpack.c.l.b16 %v88
    %v500 = vunpack.c.h.b16 %v88
    %v501 = vunpack.c.l.b16 %v89
    %v502 = vunpack.c.h.b16 %v89
    %v503 = vunpack.c.l.b16 %v90
    %v504 = vunpack.c.h.b16 %v90
    %v505 = vunpack.c.l.b16 %v91
    %v506 = vunpack.c.h.b16 %v91
    %v507 = vunpack.c.l.b16 %v92
    %v508 = vunpack.c.h.b16 %v92
    %v509 = vunpack.c.l.b16 %v93
    %v510 = vunpack.c.h.b16 %v93
    %v511 = vunpack.c.l.b16 %v94
    %v512 = vunpack.c.h.b16 %v94
    %v513 = vunpack.c.l.b16 %v95
    %v514 = vunpack.c.h.b16 %v95
    %v515 = vunpack.c.l.b16 %v96
    %v516 = vunpack.c.h.b16 %v96
    %v517 = vunpack.c.l.b16 %v97
    %v518 = vunpack.c.h.b16 %v97
    %v519 = vunpack.c.l.b16 %v98
    %v520 = vunpack.c.h.b16 %v98
    %v521 = vunpack.c.l.b16 %v99
    %v522 = vunpack.c.h.b16 %v99
    %v523 = vunpack.c.l.b16 %v100
    %v524 = vunpack.c.h.b16 %v100
    %v525 = vunpack.c.l.b16 %v101
    %v526 = vunpack.c.h.b16 %v101
    %v527 = vunpack.c.l.b16 %v102
    %v528 = vunpack.c.h.b16 %v102
    %v529 = vunpack.c.l.b16 %v103
    %v530 = vunpack.c.h.b16 %v103
    %v531 = vunpack.c.l.b16 %v104
    %v532 = vunpack.c.h.b16 %v104
    %v533 = vunpack.c.l.b16 %v105
    %v534 = vunpack.c.h.b16 %v105
    %v535 = vunpack.c.l.b16 %v106
    %v536 = vunpack.c.h.b16 %v106
    %v537 = vunpack.c.l.b16 %v107
    %v538 = vunpack.c.h.b16 %v107
    %v539 = vunpack.c.l.b16 %v108
    %v540 = vunpack.c.h.b16 %v108
    %v541 = vunpack.c.l.b16 %v109
    %v542 = vunpack.c.h.b16 %v109
    %v543 = vunpack.c.l.b16 %v110
    %v544 = vunpack.c.h.b16 %v110
    %v545 = vunpack.c.l.b16 %v111
    %v546 = vunpack.c.h.b16 %v111
    %v547 = vunpack.c.l.b16 %v112
    %v548 = vunpack.c.h.b16 %v112
    %v549 = vunpack.c.l.b16 %v113
    %v550 = vunpack.c.h.b16 %v113
    %v551 = vunpack.c.l.b16 %v114
    %v552 = vunpack.c.h.b16 %v114
    %v553 = vunpack.c.l.b16 %v115
    %v554 = vunpack.c.h.b16 %v115
    %v555 = vunpack.c.l.b16 %v116
    %v556 = vunpack.c.h.b16 %v116
    %v557 = vunpack.c.l.b16 %v117
    %v558 = vunpack.c.h.b16 %v117
    %v559 = vunpack.c.l.b16 %v118
    %v560 = vunpack.c.h.b16 %v118
    %v561 = vunpack.c.l.b16 %v119
    %v562 = vunpack.c.h.b16 %v119
    %v563 = vunpack.c.l.b16 %v120
    %v564 = vunpack.c.h.b16 %v120
    %v565 = vunpack.c.l.b16 %v121
    %v566 = vunpack.c.h.b16 %v121
    %v567 = vunpack.c.l.b16 %v122
    %v568 = vunpack.c.h.b16 %v122
    %v569 = vunpack.c.l.b16 %v123
    %v570 = vunpack.c.h.b16 %v123
    %v571 = vunpack.c.l.b16 %v124
    %v572 = vunpack.c.h.b16 %v124
    %v573 = vunpack.c.l.b16 %v125
    %v574 = vunpack.c.h.b16 %v125
    %v575 = vunpack.c.l.b16 %v126
    %v576 = vunpack.c.h.b16 %v126
    %v577 = vunpack.c.l.b16 %v127
    %v578 = vunpack.c.h.b16 %v127
    %v579 = vunpack.c.l.b16 %v128
    %v580 = vunpack.c.h.b16 %v128
    %v581 = vunpack.c.l.b16 %v129
    %v582 = vunpack.c.h.b16 %v129
    %v583 = vunpack.c.l.b16 %v130
    %v584 = vunpack.c.h.b16 %v130
    %v585 = vunpack.c.l.b16 %v131
    %v586 = vunpack.c.h.b16 %v131
    %v587 = vunpack.c.l.b16 %v132
    %v588 = vunpack.c.h.b16 %v132
    %v589 = vunpack.c.l.b16 %v133
    %v590 = vunpack.c.h.b16 %v133
    %v591 = vunpack.c.l.b16 %v134
    %v592 = vunpack.c.h.b16 %v134
    %v593 = vunpack.c.l.b16 %v135
    %v594 = vunpack.c.h.b16 %v135
    %v595 = vunpack.c.l.b16 %v136
    %v596 = vunpack.c.h.b16 %v136
    %v597 = vunpack.c.l.b16 %v137
    %v598 = vunpack.c.h.b16 %v137
    %v599 = vunpack.c.l.b16 %v138
    %v600 = vunpack.c.h.b16 %v138
    %v601 = vunpack.c.l.b16 %v139
    %v602 = vunpack.c.h.b16 %v139
    %v603 = vunpack.c.l.b16 %v140
    %v604 = vunpack.c.h.b16 %v140
    %v605 = vunpack.c.l.b16 %v141
    %v606 = vunpack.c.h.b16 %v141
    %v607 = vunpack.c.l.b16 %v142
    %v608 = vunpack.c.h.b16 %v142
    %v609 = vunpack.c.l.b16 %v143
    %v610 = vunpack.c.h.b16 %v143
    %v611 = vunpack.c.l.b16 %v144
    %v612 = vunpack.c.h.b16 %v144
    %v613 = vunpack.c.l.b16 %v145
    %v614 = vunpack.c.h.b16 %v145
    %v615 = vunpack.c.l.b16 %v146
    %v616 = vunpack.c.h.b16 %v146
    %v617 = vunpack.c.l.b16 %v147
    %v618 = vunpack.c.h.b16 %v147
    %v619 = vunpack.c.l.b16 %v148
    %v620 = vunpack.c.h.b16 %v148
    %v621 = vunpack.c.l.b16 %v149
    %v622 = vunpack.c.h.b16 %v149
    %v623 = vunpack.c.l.b16 %v150
    %v624 = vunpack.c.h.b16 %v150
    %v625 = vunpack.c.l.b16 %v151
    %v626 = vunpack.c.h.b16 %v151
    %v627 = vunpack.c.l.b16 %v152
    %v628 = vunpack.c.h.b16 %v152
    %v629 = vunpack.c.l.b16 %v153
    %v630 = vunpack.c.h.b16 %v153
    %v631 = vunpack.c.l.b16 %v154
    %v632 = vunpack.c.h.b16 %v154
    %v633 = vunpack.c.l.b16 %v155
    %v634 = vunpack.c.h.b16 %v155
    %v635 = vunpack.c.l.b16 %v156
    %v636 = vunpack.c.h.b16 %v156
    %v637 = vunpack.c.l.b16 %v157
    %v638 = vunpack.c.h.b16 %v157
    %v639 = vunpack.c.l.b16 %v158
    %v640 = vunpack.c.h.b16 %v158
    %v641 = vunpack.c.l.b16 %v159
    %v642 = vunpack.c.h.b16 %v159
    %v643 = vunpack.c.l.b16 %v160
    %v644 = vunpack.c.h.b16 %v160
    %v645 = vunpack.c.l.b16 %v161
    %v646 = vunpack.c.h.b16 %v161
    %v647 = vunpack.c.l.b16 %v162
    %v648 = vunpack.c.h.b16 %v162
    %v649 = vunpack.c.l.b16 %v163
    %v650 = vunpack.c.h.b16 %v163
    %v651 = vunpack.c.l.b16 %v164
    %v652 = vunpack.c.h.b16 %v164
    %v653 = vunpack.c.l.b16 %v165
    %v654 = vunpack.c.h.b16 %v165
    %v655 = vunpack.c.l.b16 %v166
    %v656 = vunpack.c.h.b16 %v166
    %v657 = vunpack.c.l.b16 %v167
    %v658 = vunpack.c.h.b16 %v167
    %v659 = vunpack.c.l.b16 %v168
    %v660 = vunpack.c.h.b16 %v168
    %v661 = vunpack.c.l.b16 %v169
    %v662 = vunpack.c.h.b16 %v169
    %v663 = vunpack.c.l.b16 %v170
    %v664 = vunpack.c.h.b16 %v170
    %v665 = vunpack.c.l.b16 %v171
    %v666 = vunpack.c.h.b16 %v171
    %v667 = vunpack.c.l.b16 %v172
    %v668 = vunpack.c.h.b16 %v172
    %v669 = vunpack.c.l.b16 %v173
    %v670 = vunpack.c.h.b16 %v173
    %v671 = vunpack.c.l.b16 %v174
    %v672 = vunpack.c.h.b16 %v174
    %v673 = vunpack.c.l.b16 %v175
    %v674 = vunpack.c.h.b16 %v175
    %v675 = vunpack.c.l.b16 %v176
    %v676 = vunpack.c.h.b16 %v176
    %v677 = vunpack.c.l.b16 %v177
    %v678 = vunpack.c.h.b16 %v177
    %v679 = vunpack.c.l.b16 %v178
    %v680 = vunpack.c.h.b16 %v178
    %v681 = vunpack.c.l.b16 %v179
    %v682 = vunpack.c.h.b16 %v179
    %v683 = vunpack.c.l.b16 %v180
    %v684 = vunpack.c.h.b16 %v180
    %v685 = vunpack.c.l.b16 %v181
    %v686 = vunpack.c.h.b16 %v181
    %v687 = vunpack.c.l.b16 %v182
    %v688 = vunpack.c.h.b16 %v182
    %v689 = vunpack.c.l.b16 %v183
    %v690 = vunpack.c.h.b16 %v183
    %v691 = vunpack.c.l.b16 %v184
    %v692 = vunpack.c.h.b16 %v184
    %v693 = vunpack.c.l.b16 %v185
    %v694 = vunpack.c.h.b16 %v185
    %v695 = vunpack.c.l.b16 %v186
    %v696 = vunpack.c.h.b16 %v186
    %v697 = vunpack.c.l.b16 %v187
    %v698 = vunpack.c.h.b16 %v187
    %v699 = vunpack.c.l.b16 %v188
    %v700 = vunpack.c.h.b16 %v188
    %v701 = vunpack.c.l.b16 %v189
    %v702 = vunpack.c.h.b16 %v189
    %v703 = vunpack.c.l.b16 %v190
    %v704 = vunpack.c.h.b16 %v190
    %v705 = vunpack.c.l.b16 %v191
    %v706 = vunpack.c.h.b16 %v191
    %v707 = vunpack.c.l.b16 %v192
    %v708 = vunpack.c.h.b16 %v192
    %v709 = vunpack.c.l.b16 %v193
    %v710 = vunpack.c.h.b16 %v193
    %v711 = vunpack.c.l.b16 %v194
    %v712 = vunpack.c.h.b16 %v194
    %v713 = vunpack.c.l.b16 %v195
    %v714 = vunpack.c.h.b16 %v195
    %v715 = vunpack.c.l.b16 %v196
    %v716 = vunpack.c.h.b16 %v196
    %v717 = vunpack.c.l.b16 %v197
    %v718 = vunpack.c.h.b16 %v197
    %v719 = vunpack.c.l.b16 %v198
    %v720 = vunpack.c.h.b16 %v198
    %v721 = vunpack.c.l.b16 %v199
    %v722 = vunpack.c.h.b16 %v199
    %v723 = vunpack.c.l.b16 %v200
    %v724 = vunpack.c.h.b16 %v200
    %v725 = vunpack.c.l.b16 %v201
    %v726 = vunpack.c.h.b16 %v201
    %v727 = vunpack.c.l.b16 %v202
    %v728 = vunpack.c.h.b16 %v202
    %v729 = vunpack.c.l.b16 %v203
    %v730 = vunpack.c.h.b16 %v203
    %v731 = vunpack.c.l.b16 %v204
    %v732 = vunpack.c.h.b16 %v204
    %v733 = vunpack.c.l.b16 %v205
    %v734 = vunpack.c.h.b16 %v205
    %v735 = vunpack.c.l.b16 %v206
    %v736 = vunpack.c.h.b16 %v206
    %v737 = vunpack.c.l.b16 %v207
    %v738 = vunpack.c.h.b16 %v207
    %v739 = vunpack.c.l.b16 %v208
    %v740 = vunpack.c.h.b16 %v208
    %v741 = vunpack.c.l.b16 %v209
    %v742 = vunpack.c.h.b16 %v209
    %v743 = vunpack.c.l.b16 %v210
    %v744 = vunpack.c.h.b16 %v210
    %v745 = vunpack.c.l.b16 %v211
    %v746 = vunpack.c.h.b16 %v211
    %v747 = vunpack.c.l.b16 %v212
    %v748 = vunpack.c.h.b16 %v212
    %v749 = vunpack.c.l.b16 %v213
    %v750 = vunpack.c.h.b16 %v213
    %v751 = vunpack.c.l.b16 %v214
    %v752 = vunpack.c.h.b16 %v214
    %v753 = vunpack.c.l.b16 %v215
    %v754 = vunpack.c.h.b16 %v215
    %v755 = vunpack.c.l.b16 %v216
    %v756 = vunpack.c.h.b16 %v216
    %v757 = vunpack.c.l.b16 %v217
    %v758 = vunpack.c.h.b16 %v217
    %v759 = vunpack.c.l.b16 %v218
    %v760 = vunpack.c.h.b16 %v218
    %v761 = vunpack.c.l.b16 %v219
    %v762 = vunpack.c.h.b16 %v219
    %v763 = vunpack.c.l.b16 %v220
    %v764 = vunpack.c.h.b16 %v220
    %v765 = vunpack.c.l.b16 %v221
    %v766 = vunpack.c.h.b16 %v221
    %v767 = vunpack.c.l.b16 %v222
    %v768 = vunpack.c.h.b16 %v222
    %v769 = vunpack.c.l.b16 %v223
    %v770 = vunpack.c.h.b16 %v223
    %v771 = vunpack.c.l.b16 %v224
    %v772 = vunpack.c.h.b16 %v224
    %v773 = vunpack.c.l.b16 %v225
    %v774 = vunpack.c.h.b16 %v225
    %v775 = vunpack.c.l.b16 %v226
    %v776 = vunpack.c.h.b16 %v226
    %v777 = vunpack.c.l.b16 %v227
    %v778 = vunpack.c.h.b16 %v227
    %v779 = vunpack.c.l.b16 %v228
    %v780 = vunpack.c.h.b16 %v228
    %v781 = vunpack.c.l.b16 %v229
    %v782 = vunpack.c.h.b16 %v229
    %v783 = vunpack.c.l.b16 %v230
    %v784 = vunpack.c.h.b16 %v230
    %v785 = vunpack.c.l.b16 %v231
    %v786 = vunpack.c.h.b16 %v231
    %v787 = vunpack.c.l.b16 %v232
    %v788 = vunpack.c.h.b16 %v232
    %v789 = vunpack.c.l.b16 %v233
    %v790 = vunpack.c.h.b16 %v233
    %v791 = vunpack.c.l.b16 %v234
    %v792 = vunpack.c.h.b16 %v234
    %v793 = vunpack.c.l.b16 %v235
    %v794 = vunpack.c.h.b16 %v235
    %v795 = vunpack.c.l.b16 %v236
    %v796 = vunpack.c.h.b16 %v236
    %v797 = vunpack.c.l.b16 %v237
    %v798 = vunpack.c.h.b16 %v237
    %v799 = vunpack.c.l.b16 %v238
    %v800 = vunpack.c.h.b16 %v238
    %v801 = vunpack.c.l.b16 %v239
    %v802 = vunpack.c.h.b16 %v239
    %v803 = vunpack.c.l.b16 %v240
    %v804 = vunpack.c.h.b16 %v240
    %v805 = vunpack.c.l.b16 %v241
    %v806 = vunpack.c.h.b16 %v241
    %v807 = vunpack.c.l.b16 %v242
    %v808 = vunpack.c.h.b16 %v242
    %v809 = vunpack.c.l.b16 %v243
    %v810 = vunpack.c.h.b16 %v243
    %v811 = vunpack.c.l.b16 %v244
    %v812 = vunpack.c.h.b16 %v244
    %v813 = vunpack.c.l.b16 %v245
    %v814 = vunpack.c.h.b16 %v245
    %v815 = vunpack.c.l.b16 %v246
    %v816 = vunpack.c.h.b16 %v246
    %v817 = vunpack.c.l.b16 %v247
    %v818 = vunpack.c.h.b16 %v247
    %v819 = vunpack.c.l.b16 %v248
    %v820 = vunpack.c.h.b16 %v248
    %v821 = vunpack.c.l.b16 %v249
    %v822 = vunpack.c.h.b16 %v249
    %v823 = vunpack.c.l.b16 %v250
    %v824 = vunpack.c.h.b16 %v250
    %v825 = vunpack.c.l.b16 %v251
    %v826 = vunpack.c.h.b16 %v251
    %v827 = vunpack.c.l.b16 %v252
    %v828 = vunpack.c.h.b16 %v252
    %v829 = vpack.c.b16 %v453, %v445
    %v830 = vpack.c.b16 %v454, %v446
    %v831 = vpack.c.b16 %v455, %v447
    %v832 = vpack.c.b16 %v456, %v448
    %v833 = vpack.c.b16 %v457, %v449
    %v834 = vpack.c.b16 %v458, %v450
    %v835 = vpack.c.b16 %v459, %v451
    %v836 = vpack.c.b16 %v460, %v452
    %v837 = vpack.c.b16 %v469, %v461
    %v838 = vpack.c.b16 %v470, %v462
    %v839 = vpack.c.b16 %v471, %v463
    %v840 = vpack.c.b16 %v472, %v464
    %v841 = vpack.c.b16 %v473, %v465
    %v842 = vpack.c.b16 %v474, %v466
    %v843 = vpack.c.b16 %v475, %v467
    %v844 = vpack.c.b16 %v476, %v468
    %v845 = vpack.c.b16 %v485, %v477
    %v846 = vpack.c.b16 %v486, %v478
    %v847 = vpack.c.b16 %v487, %v479
    %v848 = vpack.c.b16 %v488, %v480
    %v849 = vpack.c.b16 %v489, %v481
    %v850 = vpack.c.b16 %v490, %v482
    %v851 = vpack.c.b16 %v491, %v483
    %v852 = vpack.c.b16 %v492, %v484
    %v853 = vpack.c.b16 %v501, %v493
    %v854 = vpack.c.b16 %v502, %v494
    %v855 = vpack.c.b16 %v503, %v495
    %v856 = vpack.c.b16 %v504, %v496
    %v857 = vpack.c.b16 %v505, %v497
    %v858 = vpack.c.b16 %v506, %v498
    %v859 = vpack.c.b16 %v507, %v499
    %v860 = vpack.c.b16 %v508, %v500
    %v861 = vpack.c.b16 %v517, %v509
    %v862 = vpack.c.b16 %v518, %v510
    %v863 = vpack.c.b16 %v519, %v511
    %v864 = vpack.c.b16 %v520, %v512
    %v865 = vpack.c.b16 %v521, %v513
    %v866 = vpack.c.b16 %v522, %v514
    %v867 = vpack.c.b16 %v523, %v515
    %v868 = vpack.c.b16 %v524, %v516
    %v869 = vpack.c.b16 %v533, %v525
    %v870 = vpack.c.b16 %v534, %v526
    %v871 = vpack.c.b16 %v535, %v527
    %v872 = vpack.c.b16 %v536, %v528
    %v873 = vpack.c.b16 %v537, %v529
    %v874 = vpack.c.b16 %v538, %v530
    %v875 = vpack.c.b16 %v539, %v531
    %v876 = vpack.c.b16 %v540, %v532
    %v877 = vpack.c.b16 %v549, %v541
    %v878 = vpack.c.b16 %v550, %v542
    %v879 = vpack.c.b16 %v551, %v543
    %v880 = vpack.c.b16 %v552, %v544
    %v881 = vpack.c.b16 %v553, %v545
    %v882 = vpack.c.b16 %v554, %v546
    %v883 = vpack.c.b16 %v555, %v547
    %v884 = vpack.c.b16 %v556, %v548
    %v885 = vpack.c.b16 %v565, %v557
    %v886 = vpack.c.b16 %v566, %v558
    %v887 = vpack.c.b16 %v567, %v559
    %v888 = vpack.c.b16 %v568, %v560
    %v889 = vpack.c.b16 %v569, %v561
    %v890 = vpack.c.b16 %v570, %v562
    %v891 = vpack.c.b16 %v571, %v563
    %v892 = vpack.c.b16 %v572, %v564
    %v893 = vpack.c.b16 %v581, %v573
    %v894 = vpack.c.b16 %v582, %v574
    %v895 = vpack.c.b16 %v583, %v575
    %v896 = vpack.c.b16 %v584, %v576
    %v897 = vpack.c.b16 %v585, %v577
    %v898 = vpack.c.b16 %v586, %v578
    %v899 = vpack.c.b16 %v587, %v579
    %v900 = vpack.c.b16 %v588, %v580
    %v901 = vpack.c.b16 %v597, %v589
    %v902 = vpack.c.b16 %v598, %v590
    %v903 = vpack.c.b16 %v599, %v591
    %v904 = vpack.c.b16 %v600, %v592
    %v905 = vpack.c.b16 %v601, %v593
    %v906 = vpack.c.b16 %v602, %v594
    %v907 = vpack.c.b16 %v603, %v595
    %v908 = vpack.c.b16 %v604, %v596
    %v909 = vpack.c.b16 %v613, %v605
    %v910 = vpack.c.b16 %v614, %v606
    %v911 = vpack.c.b16 %v615, %v607
    %v912 = vpack.c.b16 %v616, %v608
    %v913 = vpack.c.b16 %v617, %v609
    %v914 = vpack.c.b16 %v618, %v610
    %v915 = vpack.c.b16 %v619, %v611
    %v916 = vpack.c.b16 %v620, %v612
    %v917 = vpack.c.b16 %v629, %v621
    %v918 = vpack.c.b16 %v630, %v622
    %v919 = vpack.c.b16 %v631, %v623
    %v920 = vpack.c.b16 %v632, %v624
    %v921 = vpack.c.b16 %v633, %v625
    %v922 = vpack.c.b16 %v634, %v626
    %v923 = vpack.c.b16 %v635, %v627
    %v924 = vpack.c.b16 %v636, %v628
    %v925 = vpack.c.b16 %v645, %v637
    %v926 = vpack.c.b16 %v646, %v638
    %v927 = vpack.c.b16 %v647, %v639
    %v928 = vpack.c.b16 %v648, %v640
    %v929 = vpack.c.b16 %v649, %v641
    %v930 = vpack.c.b16 %v650, %v642
    %v931 = vpack.c.b16 %v651, %v643
    %v932 = vpack.c.b16 %v652, %v644
    %v933 = vpack.c.b16 %v661, %v653
    %v934 = vpack.c.b16 %v662, %v654
    %v935 = vpack.c.b16 %v663, %v655
    %v936 = vpack.c.b16 %v664, %v656
    %v937 = vpack.c.b16 %v665, %v657
    %v938 = vpack.c.b16 %v666, %v658
    %v939 = vpack.c.b16 %v667, %v659
    %v940 = vpack.c.b16 %v668, %v660
    %v941 = vpack.c.b16 %v677, %v669
    %v942 = vpack.c.b16 %v678, %v670
    %v943 = vpack.c.b16 %v679, %v671
    %v944 = vpack.c.b16 %v680, %v672
    %v945 = vpack.c.b16 %v681, %v673
    %v946 = vpack.c.b16 %v682, %v674
    %v947 = vpack.c.b16 %v683, %v675
    %v948 = vpack.c.b16 %v684, %v676
    %v949 = vpack.c.b16 %v693, %v685
    %v950 = vpack.c.b16 %v694, %v686
    %v951 = vpack.c.b16 %v695, %v687
    %v952 = vpack.c.b16 %v696, %v688
    %v953 = vpack.c.b16 %v697, %v689
    %v954 = vpack.c.b16 %v698, %v690
    %v955 = vpack.c.b16 %v699, %v691
    %v956 = vpack.c.b16 %v700, %v692
    %v957 = vpack.c.b16 %v709, %v701
    %v958 = vpack.c.b16 %v710, %v702
    %v959 = vpack.c.b16 %v711, %v703
    %v960 = vpack.c.b16 %v712, %v704
    %v961 = vpack.c.b16 %v713, %v705
    %v962 = vpack.c.b16 %v714, %v706
    %v963 = vpack.c.b16 %v715, %v707
    %v964 = vpack.c.b16 %v716, %v708
    %v965 = vpack.c.b16 %v725, %v717
    %v966 = vpack.c.b16 %v726, %v718
    %v967 = vpack.c.b16 %v727, %v719
    %v968 = vpack.c.b16 %v728, %v720
    %v969 = vpack.c.b16 %v729, %v721
    %v970 = vpack.c.b16 %v730, %v722
    %v971 = vpack.c.b16 %v731, %v723
    %v972 = vpack.c.b16 %v732, %v724
    %v973 = vpack.c.b16 %v741, %v733
    %v974 = vpack.c.b16 %v742, %v734
    %v975 = vpack.c.b16 %v743, %v735
    %v976 = vpack.c.b16 %v744, %v736
    %v977 = vpack.c.b16 %v745, %v737
    %v978 = vpack.c.b16 %v746, %v738
    %v979 = vpack.c.b16 %v747, %v739
    %v980 = vpack.c.b16 %v748, %v740
    %v981 = vpack.c.b16 %v757, %v749
    %v982 = vpack.c.b16 %v758, %v750
    %v983 = vpack.c.b16 %v759, %v751
    %v984 = vpack.c.b16 %v760, %v752
    %v985 = vpack.c.b16 %v761, %v753
    %v986 = vpack.c.b16 %v762, %v754
    %v987 = vpack.c.b16 %v763, %v755
    %v988 = vpack.c.b16 %v764, %v756
    %v989 = vpack.c.b16 %v773, %v765
    %v990 = vpack.c.b16 %v774, %v766
    %v991 = vpack.c.b16 %v775, %v767
    %v992 = vpack.c.b16 %v776, %v768
    %v993 = vpack.c.b16 %v777, %v769
    %v994 = vpack.c.b16 %v778, %v770
    %v995 = vpack.c.b16 %v779, %v771
    %v996 = vpack.c.b16 %v780, %v772
    %v997 = vpack.c.b16 %v789, %v781
    %v998 = vpack.c.b16 %v790, %v782
    %v999 = vpack.c.b16 %v791, %v783
    %v1000 = vpack.c.b16 %v792, %v784
    %v1001 = vpack.c.b16 %v793, %v785
    %v1002 = vpack.c.b16 %v794, %v786
    %v1003 = vpack.c.b16 %v795, %v787
    %v1004 = vpack.c.b16 %v796, %v788
    %v1005 = vpack.c.b16 %v805, %v797
    %v1006 = vpack.c.b16 %v806, %v798
    %v1007 = vpack.c.b16 %v807, %v799
    %v1008 = vpack.c.b16 %v808, %v800
    %v1009 = vpack.c.b16 %v809, %v801
    %v1010 = vpack.c.b16 %v810, %v802
    %v1011 = vpack.c.b16 %v811, %v803
    %v1012 = vpack.c.b16 %v812, %v804
    %v1013 = vpack.c.b16 %v821, %v813
    %v1014 = vpack.c.b16 %v822, %v814
    %v1015 = vpack.c.b16 %v823, %v815
    %v1016 = vpack.c.b16 %v824, %v816
    %v1017 = vpack.c.b16 %v825, %v817
    %v1018 = vpack.c.b16 %v826, %v818
    %v1019 = vpack.c.b16 %v827, %v819
    %v1020 = vpack.c.b16 %v828, %v820
    %1213 = vmatprep.subr.bf16.mxu0 %v886
    %1214 = vmatpush1.bf16.msra.mxu0 %v885
    %1215 = vmatprep.subr.bf16.mxu0 %v878
    %1216 = vmatpush1.bf16.msra.mxu0 %v877
    %1217 = vmatprep.subr.bf16.mxu0 %v870
    %1218 = vmatpush1.bf16.msra.mxu0 %v869
    %1219 = vmatprep.subr.bf16.mxu0 %v862
    %1220 = vmatpush1.bf16.msra.mxu0 %v861
    %1221 = vmatprep.subr.bf16.mxu0 %v854
    %1222 = vmatpush1.bf16.msra.mxu0 %v853
    %1223 = vmatprep.subr.bf16.mxu0 %v846
    %1224 = vmatpush1.bf16.msra.mxu0 %v845
    %1225 = vmatprep.subr.bf16.mxu0 %v838
    %1226 = vmatpush1.bf16.msra.mxu0 %v837
    %1227 = vmatprep.subr.bf16.mxu0 %v830
    %1228 = vmatpush1.bf16.msra.mxu0 %v829
    %1229 = vmatprep.subr.bf16.mxu0 %v950
    %1230 = vmatpush2.bf16.msra.mxu0 %v949
    %1231 = vmatprep.subr.bf16.mxu0 %v942
    %1232 = vmatpush2.bf16.msra.mxu0 %v941
    %1233 = vmatprep.subr.bf16.mxu0 %v934
    %1234 = vmatpush2.bf16.msra.mxu0 %v933
    %1235 = vmatprep.subr.bf16.mxu0 %v926
    %1236 = vmatpush2.bf16.msra.mxu0 %v925
    %1237 = vmatprep.subr.bf16.mxu0 %v918
    %1238 = vmatpush2.bf16.msra.mxu0 %v917
    %1239 = vmatprep.subr.bf16.mxu0 %v910
    %1240 = vmatpush2.bf16.msra.mxu0 %v909
    %1241 = vmatprep.subr.bf16.mxu0 %v902
    %1242 = vmatpush2.bf16.msra.mxu0 %v901
    %1243 = vmatprep.subr.bf16.mxu0 %v894
    %1244 = vmatpush2.bf16.msra.mxu0 %v893
    %1245 = vmatprep.mubr.bf16.mxu0 %v57
    %1246 = vmatmul.mubr.bf16.gmra.mxu0 %v54
    %v1247 = vpop.f32.mrf.mxu0
    %v1248 = vadd.f32 0.0, %v1247
    %v1249 = vpop.f32.mrf.mxu0
    %v1250 = vadd.f32 0.0, %v1249
    %v1251 = vpop.f32.mrf.mxu0
    %v1252 = vpop.f32.mrf.mxu0
    %1253 = vdwg.mxu0
    %1254 = vmatprep.subr.bf16.mxu0 %v1014
    %1255 = vmatpush1.bf16.msra.mxu0 %v1013
    %1256 = vmatprep.subr.bf16.mxu0 %v1006
    %1257 = vmatpush1.bf16.msra.mxu0 %v1005
    %1258 = vmatprep.subr.bf16.mxu0 %v998
    %1259 = vmatpush1.bf16.msra.mxu0 %v997
    %1260 = vmatprep.subr.bf16.mxu0 %v990
    %1261 = vmatpush1.bf16.msra.mxu0 %v989
    %1262 = vmatprep.subr.bf16.mxu0 %v982
    %1263 = vmatpush1.bf16.msra.mxu0 %v981
    %1264 = vmatprep.subr.bf16.mxu0 %v974
    %1265 = vmatpush1.bf16.msra.mxu0 %v973
    %1266 = vmatprep.subr.bf16.mxu0 %v966
    %1267 = vmatpush1.bf16.msra.mxu0 %v965
    %1268 = vmatprep.subr.bf16.mxu0 %v958
    %1269 = vmatpush1.bf16.msra.mxu0 %v957
    %1270 = vmatprep.subr.bf16.mxu0 0
    %1271 = vmatpush2.bf16.msra.mxu0 0
    %1272 = vmatprep.subr.bf16.mxu0 0
    %1273 = vmatpush2.bf16.msra.mxu0 0
    %1274 = vmatprep.subr.bf16.mxu0 0
    %1275 = vmatpush2.bf16.msra.mxu0 0
    %1276 = vmatprep.subr.bf16.mxu0 0
    %1277 = vmatpush2.bf16.msra.mxu0 0
    %1278 = vmatprep.subr.bf16.mxu0 0
    %1279 = vmatpush2.bf16.msra.mxu0 0
    %1280 = vmatprep.subr.bf16.mxu0 0
    %1281 = vmatpush2.bf16.msra.mxu0 0
    %1282 = vmatprep.subr.bf16.mxu0 0
    %1283 = vmatpush2.bf16.msra.mxu0 0
    %1284 = vmatprep.subr.bf16.mxu0 0
    %1285 = vmatpush2.bf16.msra.mxu0 0
    %1286 = vmatprep.mubr.bf16.mxu0 0
    %1287 = vmatmul.mubr.bf16.gmra.mxu0 %v60
    %v1288 = vpop.f32.mrf.mxu0
    %v1289 = vadd.f32 %v1248, %v1288
    %v1290 = vpop.f32.mrf.mxu0
    %v1291 = vadd.f32 %v1250, %v1290
    %v1292 = vpop.f32.mrf.mxu0
    %v1293 = vpop.f32.mrf.mxu0
    %1294 = vdwg.mxu0
    %1295 = vmatprep.subr.bf16.mxu0 %v888
    %1296 = vmatpush1.bf16.msra.mxu0 %v887
    %1297 = vmatprep.subr.bf16.mxu0 %v880
    %1298 = vmatpush1.bf16.msra.mxu0 %v879
    %1299 = vmatprep.subr.bf16.mxu0 %v872
    %1300 = vmatpush1.bf16.msra.mxu0 %v871
    %1301 = vmatprep.subr.bf16.mxu0 %v864
    %1302 = vmatpush1.bf16.msra.mxu0 %v863
    %1303 = vmatprep.subr.bf16.mxu0 %v856
    %1304 = vmatpush1.bf16.msra.mxu0 %v855
    %1305 = vmatprep.subr.bf16.mxu0 %v848
    %1306 = vmatpush1.bf16.msra.mxu0 %v847
    %1307 = vmatprep.subr.bf16.mxu0 %v840
    %1308 = vmatpush1.bf16.msra.mxu0 %v839
    %1309 = vmatprep.subr.bf16.mxu0 %v832
    %1310 = vmatpush1.bf16.msra.mxu0 %v831
    %1311 = vmatprep.subr.bf16.mxu0 %v952
    %1312 = vmatpush2.bf16.msra.mxu0 %v951
    %1313 = vmatprep.subr.bf16.mxu0 %v944
    %1314 = vmatpush2.bf16.msra.mxu0 %v943
    %1315 = vmatprep.subr.bf16.mxu0 %v936
    %1316 = vmatpush2.bf16.msra.mxu0 %v935
    %1317 = vmatprep.subr.bf16.mxu0 %v928
    %1318 = vmatpush2.bf16.msra.mxu0 %v927
    %1319 = vmatprep.subr.bf16.mxu0 %v920
    %1320 = vmatpush2.bf16.msra.mxu0 %v919
    %1321 = vmatprep.subr.bf16.mxu0 %v912
    %1322 = vmatpush2.bf16.msra.mxu0 %v911
    %1323 = vmatprep.subr.bf16.mxu0 %v904
    %1324 = vmatpush2.bf16.msra.mxu0 %v903
    %1325 = vmatprep.subr.bf16.mxu0 %v896
    %1326 = vmatpush2.bf16.msra.mxu0 %v895
    %1327 = vmatprep.mubr.bf16.mxu0 %v57
    %1328 = vmatmul.mubr.bf16.gmra.mxu0 %v54
    %v1329 = vpop.f32.mrf.mxu0
    %v1330 = vadd.f32 0.0, %v1329
    %v1331 = vpop.f32.mrf.mxu0
    %v1332 = vadd.f32 0.0, %v1331
    %v1333 = vpop.f32.mrf.mxu0
    %v1334 = vpop.f32.mrf.mxu0
    %1335 = vdwg.mxu0
    %1336 = vmatprep.subr.bf16.mxu0 %v1016
    %1337 = vmatpush1.bf16.msra.mxu0 %v1015
    %1338 = vmatprep.subr.bf16.mxu0 %v1008
    %1339 = vmatpush1.bf16.msra.mxu0 %v1007
    %1340 = vmatprep.subr.bf16.mxu0 %v1000
    %1341 = vmatpush1.bf16.msra.mxu0 %v999
    %1342 = vmatprep.subr.bf16.mxu0 %v992
    %1343 = vmatpush1.bf16.msra.mxu0 %v991
    %1344 = vmatprep.subr.bf16.mxu0 %v984
    %1345 = vmatpush1.bf16.msra.mxu0 %v983
    %1346 = vmatprep.subr.bf16.mxu0 %v976
    %1347 = vmatpush1.bf16.msra.mxu0 %v975
    %1348 = vmatprep.subr.bf16.mxu0 %v968
    %1349 = vmatpush1.bf16.msra.mxu0 %v967
    %1350 = vmatprep.subr.bf16.mxu0 %v960
    %1351 = vmatpush1.bf16.msra.mxu0 %v959
    %1352 = vmatprep.subr.bf16.mxu0 0
    %1353 = vmatpush2.bf16.msra.mxu0 0
    %1354 = vmatprep.subr.bf16.mxu0 0
    %1355 = vmatpush2.bf16.msra.mxu0 0
    %1356 = vmatprep.subr.bf16.mxu0 0
    %1357 = vmatpush2.bf16.msra.mxu0 0
    %1358 = vmatprep.subr.bf16.mxu0 0
    %1359 = vmatpush2.bf16.msra.mxu0 0
    %1360 = vmatprep.subr.bf16.mxu0 0
    %1361 = vmatpush2.bf16.msra.mxu0 0
    %1362 = vmatprep.subr.bf16.mxu0 0
    %1363 = vmatpush2.bf16.msra.mxu0 0
    %1364 = vmatprep.subr.bf16.mxu0 0
    %1365 = vmatpush2.bf16.msra.mxu0 0
    %1366 = vmatprep.subr.bf16.mxu0 0
    %1367 = vmatpush2.bf16.msra.mxu0 0
    %1368 = vmatprep.mubr.bf16.mxu0 0
    %1369 = vmatmul.mubr.bf16.gmra.mxu0 %v60
    %v1370 = vpop.f32.mrf.mxu0
    %v1371 = vadd.f32 %v1330, %v1370
    %v1372 = vpop.f32.mrf.mxu0
    %v1373 = vadd.f32 %v1332, %v1372
    %v1374 = vpop.f32.mrf.mxu0
    %v1375 = vpop.f32.mrf.mxu0
    %1376 = vdwg.mxu0
    %1377 = vmatprep.subr.bf16.mxu0 %v890
    %1378 = vmatpush1.bf16.msra.mxu0 %v889
    %1379 = vmatprep.subr.bf16.mxu0 %v882
    %1380 = vmatpush1.bf16.msra.mxu0 %v881
    %1381 = vmatprep.subr.bf16.mxu0 %v874
    %1382 = vmatpush1.bf16.msra.mxu0 %v873
    %1383 = vmatprep.subr.bf16.mxu0 %v866
    %1384 = vmatpush1.bf16.msra.mxu0 %v865
    %1385 = vmatprep.subr.bf16.mxu0 %v858
    %1386 = vmatpush1.bf16.msra.mxu0 %v857
    %1387 = vmatprep.subr.bf16.mxu0 %v850
    %1388 = vmatpush1.bf16.msra.mxu0 %v849
    %1389 = vmatprep.subr.bf16.mxu0 %v842
    %1390 = vmatpush1.bf16.msra.mxu0 %v841
    %1391 = vmatprep.subr.bf16.mxu0 %v834
    %1392 = vmatpush1.bf16.msra.mxu0 %v833
    %1393 = vmatprep.subr.bf16.mxu0 %v954
    %1394 = vmatpush2.bf16.msra.mxu0 %v953
    %1395 = vmatprep.subr.bf16.mxu0 %v946
    %1396 = vmatpush2.bf16.msra.mxu0 %v945
    %1397 = vmatprep.subr.bf16.mxu0 %v938
    %1398 = vmatpush2.bf16.msra.mxu0 %v937
    %1399 = vmatprep.subr.bf16.mxu0 %v930
    %1400 = vmatpush2.bf16.msra.mxu0 %v929
    %1401 = vmatprep.subr.bf16.mxu0 %v922
    %1402 = vmatpush2.bf16.msra.mxu0 %v921
    %1403 = vmatprep.subr.bf16.mxu0 %v914
    %1404 = vmatpush2.bf16.msra.mxu0 %v913
    %1405 = vmatprep.subr.bf16.mxu0 %v906
    %1406 = vmatpush2.bf16.msra.mxu0 %v905
    %1407 = vmatprep.subr.bf16.mxu0 %v898
    %1408 = vmatpush2.bf16.msra.mxu0 %v897
    %1409 = vmatprep.mubr.bf16.mxu0 %v57
    %1410 = vmatmul.mubr.bf16.gmra.mxu0 %v54
    %v1411 = vpop.f32.mrf.mxu0
    %v1412 = vadd.f32 0.0, %v1411
    %v1413 = vpop.f32.mrf.mxu0
    %v1414 = vadd.f32 0.0, %v1413
    %v1415 = vpop.f32.mrf.mxu0
    %v1416 = vpop.f32.mrf.mxu0
    %1417 = vdwg.mxu0
    %1418 = vmatprep.subr.bf16.mxu0 %v1018
    %1419 = vmatpush1.bf16.msra.mxu0 %v1017
    %1420 = vmatprep.subr.bf16.mxu0 %v1010
    %1421 = vmatpush1.bf16.msra.mxu0 %v1009
    %1422 = vmatprep.subr.bf16.mxu0 %v1002
    %1423 = vmatpush1.bf16.msra.mxu0 %v1001
    %1424 = vmatprep.subr.bf16.mxu0 %v994
    %1425 = vmatpush1.bf16.msra.mxu0 %v993
    %1426 = vmatprep.subr.bf16.mxu0 %v986
    %1427 = vmatpush1.bf16.msra.mxu0 %v985
    %1428 = vmatprep.subr.bf16.mxu0 %v978
    %1429 = vmatpush1.bf16.msra.mxu0 %v977
    %1430 = vmatprep.subr.bf16.mxu0 %v970
    %1431 = vmatpush1.bf16.msra.mxu0 %v969
    %1432 = vmatprep.subr.bf16.mxu0 %v962
    %1433 = vmatpush1.bf16.msra.mxu0 %v961
    %1434 = vmatprep.subr.bf16.mxu0 0
    %1435 = vmatpush2.bf16.msra.mxu0 0
    %1436 = vmatprep.subr.bf16.mxu0 0
    %1437 = vmatpush2.bf16.msra.mxu0 0
    %1438 = vmatprep.subr.bf16.mxu0 0
    %1439 = vmatpush2.bf16.msra.mxu0 0
    %1440 = vmatprep.subr.bf16.mxu0 0
    %1441 = vmatpush2.bf16.msra.mxu0 0
    %1442 = vmatprep.subr.bf16.mxu0 0
    %1443 = vmatpush2.bf16.msra.mxu0 0
    %1444 = vmatprep.subr.bf16.mxu0 0
    %1445 = vmatpush2.bf16.msra.mxu0 0
    %1446 = vmatprep.subr.bf16.mxu0 0
    %1447 = vmatpush2.bf16.msra.mxu0 0
    %1448 = vmatprep.subr.bf16.mxu0 0
    %1449 = vmatpush2.bf16.msra.mxu0 0
    %1450 = vmatprep.mubr.bf16.mxu0 0
    %1451 = vmatmul.mubr.bf16.gmra.mxu0 %v60
    %v1452 = vpop.f32.mrf.mxu0
    %v1453 = vadd.f32 %v1412, %v1452
    %v1454 = vpop.f32.mrf.mxu0
    %v1455 = vadd.f32 %v1414, %v1454
    %v1456 = vpop.f32.mrf.mxu0
    %v1457 = vpop.f32.mrf.mxu0
    %1458 = vdwg.mxu0
    %1459 = vmatprep.subr.bf16.mxu0 %v892
    %1460 = vmatpush1.bf16.msra.mxu0 %v891
    %1461 = vmatprep.subr.bf16.mxu0 %v884
    %1462 = vmatpush1.bf16.msra.mxu0 %v883
    %1463 = vmatprep.subr.bf16.mxu0 %v876
    %1464 = vmatpush1.bf16.msra.mxu0 %v875
    %1465 = vmatprep.subr.bf16.mxu0 %v868
    %1466 = vmatpush1.bf16.msra.mxu0 %v867
    %1467 = vmatprep.subr.bf16.mxu0 %v860
    %1468 = vmatpush1.bf16.msra.mxu0 %v859
    %1469 = vmatprep.subr.bf16.mxu0 %v852
    %1470 = vmatpush1.bf16.msra.mxu0 %v851
    %1471 = vmatprep.subr.bf16.mxu0 %v844
    %1472 = vmatpush1.bf16.msra.mxu0 %v843
    %1473 = vmatprep.subr.bf16.mxu0 %v836
    %1474 = vmatpush1.bf16.msra.mxu0 %v835
    %1475 = vmatprep.subr.bf16.mxu0 %v956
    %1476 = vmatpush2.bf16.msra.mxu0 %v955
    %1477 = vmatprep.subr.bf16.mxu0 %v948
    %1478 = vmatpush2.bf16.msra.mxu0 %v947
    %1479 = vmatprep.subr.bf16.mxu0 %v940
    %1480 = vmatpush2.bf16.msra.mxu0 %v939
    %1481 = vmatprep.subr.bf16.mxu0 %v932
    %1482 = vmatpush2.bf16.msra.mxu0 %v931
    %1483 = vmatprep.subr.bf16.mxu0 %v924
    %1484 = vmatpush2.bf16.msra.mxu0 %v923
    %1485 = vmatprep.subr.bf16.mxu0 %v916
    %1486 = vmatpush2.bf16.msra.mxu0 %v915
    %1487 = vmatprep.subr.bf16.mxu0 %v908
    %1488 = vmatpush2.bf16.msra.mxu0 %v907
    %1489 = vmatprep.subr.bf16.mxu0 %v900
    %1490 = vmatpush2.bf16.msra.mxu0 %v899
    %1491 = vmatprep.mubr.bf16.mxu0 %v57
    %1492 = vmatmul.mubr.bf16.gmra.mxu0 %v54
    %v1493 = vpop.f32.mrf.mxu0
    %v1494 = vadd.f32 0.0, %v1493
    %v1495 = vpop.f32.mrf.mxu0
    %v1496 = vadd.f32 0.0, %v1495
    %v1497 = vpop.f32.mrf.mxu0
    %v1498 = vpop.f32.mrf.mxu0
    %1499 = vdwg.mxu0
    %1500 = vmatprep.subr.bf16.mxu0 %v1020
    %1501 = vmatpush1.bf16.msra.mxu0 %v1019
    %1502 = vmatprep.subr.bf16.mxu0 %v1012
    %1503 = vmatpush1.bf16.msra.mxu0 %v1011
    %1504 = vmatprep.subr.bf16.mxu0 %v1004
    %1505 = vmatpush1.bf16.msra.mxu0 %v1003
    %1506 = vmatprep.subr.bf16.mxu0 %v996
    %1507 = vmatpush1.bf16.msra.mxu0 %v995
    %1508 = vmatprep.subr.bf16.mxu0 %v988
    %1509 = vmatpush1.bf16.msra.mxu0 %v987
    %1510 = vmatprep.subr.bf16.mxu0 %v980
    %1511 = vmatpush1.bf16.msra.mxu0 %v979
    %1512 = vmatprep.subr.bf16.mxu0 %v972
    %1513 = vmatpush1.bf16.msra.mxu0 %v971
    %1514 = vmatprep.subr.bf16.mxu0 %v964
    %1515 = vmatpush1.bf16.msra.mxu0 %v963
    %1516 = vmatprep.subr.bf16.mxu0 0
    %1517 = vmatpush2.bf16.msra.mxu0 0
    %1518 = vmatprep.subr.bf16.mxu0 0
    %1519 = vmatpush2.bf16.msra.mxu0 0
    %1520 = vmatprep.subr.bf16.mxu0 0
    %1521 = vmatpush2.bf16.msra.mxu0 0
    %1522 = vmatprep.subr.bf16.mxu0 0
    %1523 = vmatpush2.bf16.msra.mxu0 0
    %1524 = vmatprep.subr.bf16.mxu0 0
    %1525 = vmatpush2.bf16.msra.mxu0 0
    %1526 = vmatprep.subr.bf16.mxu0 0
    %1527 = vmatpush2.bf16.msra.mxu0 0
    %1528 = vmatprep.subr.bf16.mxu0 0
    %1529 = vmatpush2.bf16.msra.mxu0 0
    %1530 = vmatprep.subr.bf16.mxu0 0
    %1531 = vmatpush2.bf16.msra.mxu0 0
    %1532 = vmatprep.mubr.bf16.mxu0 0
    %1533 = vmatmul.mubr.bf16.gmra.mxu0 %v60
    %v1534 = vpop.f32.mrf.mxu0
    %v1535 = vadd.f32 %v1494, %v1534
    %v1536 = vpop.f32.mrf.mxu0
    %v1537 = vadd.f32 %v1496, %v1536
    %v1538 = vpop.f32.mrf.mxu0
    %v1539 = vpop.f32.mrf.mxu0
    %1540 = vdwg.mxu0
    %vm1541 = vcmp.eq.f32.partialorder %v1289, 0.0
    %vm1542 = vcmp.eq.f32.partialorder %v1291, 0.0
    %vm1543 = vcmp.eq.f32.partialorder %v1371, 0.0
    %vm1544 = vcmp.eq.f32.partialorder %v1373, 0.0
    %vm1545 = vcmp.eq.f32.partialorder %v1453, 0.0
    %vm1546 = vcmp.eq.f32.partialorder %v1455, 0.0
    %vm1547 = vcmp.eq.f32.partialorder %v1535, 0.0
    %vm1548 = vcmp.eq.f32.partialorder %v1537, 0.0
    %v1549 = vsel %vm1541, 1.0, %v1289
    %v1550 = vsel %vm1542, 1.0, %v1291
    %v1551 = vsel %vm1543, 1.0, %v1371
    %v1552 = vsel %vm1544, 1.0, %v1373
    %v1553 = vsel %vm1545, 1.0, %v1453
    %v1554 = vsel %vm1546, 1.0, %v1455
    %v1555 = vsel %vm1547, 1.0, %v1535
    %v1556 = vsel %vm1548, 1.0, %v1537
    %v1557 = vrcp.pop %v1549
    %v1558 = vrcp.pop %v1550
    %v1559 = vrcp.pop %v1551
    %v1560 = vrcp.pop %v1552
    %v1561 = vrcp.pop %v1553
    %v1562 = vrcp.pop %v1554
    %v1563 = vrcp.pop %v1555
    %v1564 = vrcp.pop %v1556
    %v1565 = vmul.f32 %v1549, %v1557
    %v1566 = vmul.f32 %v1550, %v1558
    %v1567 = vmul.f32 %v1551, %v1559
    %v1568 = vmul.f32 %v1552, %v1560
    %v1569 = vmul.f32 %v1553, %v1561
    %v1570 = vmul.f32 %v1554, %v1562
    %v1571 = vmul.f32 %v1555, %v1563
    %v1572 = vmul.f32 %v1556, %v1564
    %v1573 = vsub.f32 2.0, %v1565
    %v1574 = vsub.f32 2.0, %v1566
    %v1575 = vsub.f32 2.0, %v1567
    %v1576 = vsub.f32 2.0, %v1568
    %v1577 = vsub.f32 2.0, %v1569
    %v1578 = vsub.f32 2.0, %v1570
    %v1579 = vsub.f32 2.0, %v1571
    %v1580 = vsub.f32 2.0, %v1572
    %v1581 = vmul.f32 %v1557, %v1573
    %v1582 = vmul.f32 %v1558, %v1574
    %v1583 = vmul.f32 %v1559, %v1575
    %v1584 = vmul.f32 %v1560, %v1576
    %v1585 = vmul.f32 %v1561, %v1577
    %v1586 = vmul.f32 %v1562, %v1578
    %v1587 = vmul.f32 %v1563, %v1579
    %v1588 = vmul.f32 %v1564, %v1580
    %v1589 = vld [vmem:[#allocation7] sm:$0xff]
    %v1591 = vlaneseq
    %v1592 = vshrl.u32 %v1591, 7
    %v1593 = vsub.s32 0, %v1592
    %v1594 = vrot.slane %v1589, %v1593
    %v1595 = vlaneseq
    %v1596 = vshrl.u32 %v1595, 7
    %v1597 = vsub.s32 1, %v1596
    %v1598 = vrot.slane %v1589, %v1597
    %v1599 = vlaneseq
    %v1600 = vshrl.u32 %v1599, 7
    %v1601 = vsub.s32 2, %v1600
    %v1602 = vrot.slane %v1589, %v1601
    %v1603 = vlaneseq
    %v1604 = vshrl.u32 %v1603, 7
    %v1605 = vsub.s32 3, %v1604
    %v1606 = vrot.slane %v1589, %v1605
    %v1607 = vlaneseq
    %v1608 = vshrl.u32 %v1607, 7
    %v1609 = vsub.s32 4, %v1608
    %v1610 = vrot.slane %v1589, %v1609
    %v1611 = vlaneseq
    %v1612 = vshrl.u32 %v1611, 7
    %v1613 = vsub.s32 5, %v1612
    %v1614 = vrot.slane %v1589, %v1613
    %v1615 = vlaneseq
    %v1616 = vshrl.u32 %v1615, 7
    %v1617 = vsub.s32 6, %v1616
    %v1618 = vrot.slane %v1589, %v1617
    %v1619 = vlaneseq
    %v1620 = vshrl.u32 %v1619, 7
    %v1621 = vsub.s32 7, %v1620
    %v1622 = vrot.slane %v1589, %v1621
    %v1631 = vmul.f32 %v1289, %v1594
    %v1632 = vmul.f32 %v1291, %v1598
    %v1633 = vmul.f32 %v1371, %v1602
    %v1634 = vmul.f32 %v1373, %v1606
    %v1635 = vmul.f32 %v1453, %v1610
    %v1636 = vmul.f32 %v1455, %v1614
    %v1637 = vmul.f32 %v1535, %v1618
    %v1638 = vmul.f32 %v1537, %v1622
    %v1639 = vmul.f32 %v1631, 0.31830987
    %v1640 = vmul.f32 %v1632, 0.31830987
    %v1641 = vmul.f32 %v1633, 0.31830987
    %v1642 = vmul.f32 %v1634, 0.31830987
    %v1643 = vmul.f32 %v1635, 0.31830987
    %v1644 = vmul.f32 %v1636, 0.31830987
    %v1645 = vmul.f32 %v1637, 0.31830987
    %v1646 = vmul.f32 %v1638, 0.31830987
    %v1647 = vadd.f32 %v1639, 0.5
    %v1648 = vadd.f32 %v1640, 0.5
    %v1649 = vadd.f32 %v1641, 0.5
    %v1650 = vadd.f32 %v1642, 0.5
    %v1651 = vadd.f32 %v1643, 0.5
    %v1652 = vadd.f32 %v1644, 0.5
    %v1653 = vadd.f32 %v1645, 0.5
    %v1654 = vadd.f32 %v1646, 0.5
    %v1655 = vfloor.f32 %v1647
    %v1656 = vfloor.f32 %v1648
    %v1657 = vfloor.f32 %v1649
    %v1658 = vfloor.f32 %v1650
    %v1659 = vfloor.f32 %v1651
    %v1660 = vfloor.f32 %v1652
    %v1661 = vfloor.f32 %v1653
    %v1662 = vfloor.f32 %v1654
    %v1663 = vmul.f32 %v1655, 3.140625
    %v1664 = vmul.f32 %v1656, 3.140625
    %v1665 = vmul.f32 %v1657, 3.140625
    %v1666 = vmul.f32 %v1658, 3.140625
    %v1667 = vmul.f32 %v1659, 3.140625
    %v1668 = vmul.f32 %v1660, 3.140625
    %v1669 = vmul.f32 %v1661, 3.140625
    %v1670 = vmul.f32 %v1662, 3.140625
    %v1671 = vsub.f32 %v1631, %v1663
    %v1672 = vsub.f32 %v1632, %v1664
    %v1673 = vsub.f32 %v1633, %v1665
    %v1674 = vsub.f32 %v1634, %v1666
    %v1675 = vsub.f32 %v1635, %v1667
    %v1676 = vsub.f32 %v1636, %v1668
    %v1677 = vsub.f32 %v1637, %v1669
    %v1678 = vsub.f32 %v1638, %v1670
    %v1679 = vmul.f32 %v1655, 0.00096702576
    %v1680 = vmul.f32 %v1656, 0.00096702576
    %v1681 = vmul.f32 %v1657, 0.00096702576
    %v1682 = vmul.f32 %v1658, 0.00096702576
    %v1683 = vmul.f32 %v1659, 0.00096702576
    %v1684 = vmul.f32 %v1660, 0.00096702576
    %v1685 = vmul.f32 %v1661, 0.00096702576
    %v1686 = vmul.f32 %v1662, 0.00096702576
    %v1687 = vsub.f32 %v1671, %v1679
    %v1688 = vsub.f32 %v1672, %v1680
    %v1689 = vsub.f32 %v1673, %v1681
    %v1690 = vsub.f32 %v1674, %v1682
    %v1691 = vsub.f32 %v1675, %v1683
    %v1692 = vsub.f32 %v1676, %v1684
    %v1693 = vsub.f32 %v1677, %v1685
    %v1694 = vsub.f32 %v1678, %v1686
    %v1695 = vmul.f32 %v1655, 6.277114e-07
    %v1696 = vmul.f32 %v1656, 6.277114e-07
    %v1697 = vmul.f32 %v1657, 6.277114e-07
    %v1698 = vmul.f32 %v1658, 6.277114e-07
    %v1699 = vmul.f32 %v1659, 6.277114e-07
    %v1700 = vmul.f32 %v1660, 6.277114e-07
    %v1701 = vmul.f32 %v1661, 6.277114e-07
    %v1702 = vmul.f32 %v1662, 6.277114e-07
    %v1703 = vsub.f32 %v1687, %v1695
    %v1704 = vsub.f32 %v1688, %v1696
    %v1705 = vsub.f32 %v1689, %v1697
    %v1706 = vsub.f32 %v1690, %v1698
    %v1707 = vsub.f32 %v1691, %v1699
    %v1708 = vsub.f32 %v1692, %v1700
    %v1709 = vsub.f32 %v1693, %v1701
    %v1710 = vsub.f32 %v1694, %v1702
    %v1711 = vmul.f32 %v1703, %v1703
    %v1712 = vmul.f32 %v1704, %v1704
    %v1713 = vmul.f32 %v1705, %v1705
    %v1714 = vmul.f32 %v1706, %v1706
    %v1715 = vmul.f32 %v1707, %v1707
    %v1716 = vmul.f32 %v1708, %v1708
    %v1717 = vmul.f32 %v1709, %v1709
    %v1718 = vmul.f32 %v1710, %v1710
    %v1719 = vmul.f32 %v1711, -2.5052108e-08
    %v1720 = vmul.f32 %v1712, -2.5052108e-08
    %v1721 = vmul.f32 %v1713, -2.5052108e-08
    %v1722 = vmul.f32 %v1714, -2.5052108e-08
    %v1723 = vmul.f32 %v1715, -2.5052108e-08
    %v1724 = vmul.f32 %v1716, -2.5052108e-08
    %v1725 = vmul.f32 %v1717, -2.5052108e-08
    %v1726 = vmul.f32 %v1718, -2.5052108e-08
    %v1727 = vadd.f32 %v1719, 2.7557319e-06
    %v1728 = vadd.f32 %v1720, 2.7557319e-06
    %v1729 = vadd.f32 %v1721, 2.7557319e-06
    %v1730 = vadd.f32 %v1722, 2.7557319e-06
    %v1731 = vadd.f32 %v1723, 2.7557319e-06
    %v1732 = vadd.f32 %v1724, 2.7557319e-06
    %v1733 = vadd.f32 %v1725, 2.7557319e-06
    %v1734 = vadd.f32 %v1726, 2.7557319e-06
    %v1735 = vmul.f32 %v1727, %v1711
    %v1736 = vmul.f32 %v1728, %v1712
    %v1737 = vmul.f32 %v1729, %v1713
    %v1738 = vmul.f32 %v1730, %v1714
    %v1739 = vmul.f32 %v1731, %v1715
    %v1740 = vmul.f32 %v1732, %v1716
    %v1741 = vmul.f32 %v1733, %v1717
    %v1742 = vmul.f32 %v1734, %v1718
    %v1743 = vadd.f32 %v1735, -0.0001984127
    %v1744 = vadd.f32 %v1736, -0.0001984127
    %v1745 = vadd.f32 %v1737, -0.0001984127
    %v1746 = vadd.f32 %v1738, -0.0001984127
    %v1747 = vadd.f32 %v1739, -0.0001984127
    %v1748 = vadd.f32 %v1740, -0.0001984127
    %v1749 = vadd.f32 %v1741, -0.0001984127
    %v1750 = vadd.f32 %v1742, -0.0001984127
    %v1751 = vmul.f32 %v1743, %v1711
    %v1752 = vmul.f32 %v1744, %v1712
    %v1753 = vmul.f32 %v1745, %v1713
    %v1754 = vmul.f32 %v1746, %v1714
    %v1755 = vmul.f32 %v1747, %v1715
    %v1756 = vmul.f32 %v1748, %v1716
    %v1757 = vmul.f32 %v1749, %v1717
    %v1758 = vmul.f32 %v1750, %v1718
    %v1759 = vadd.f32 %v1751, 0.008333334
    %v1760 = vadd.f32 %v1752, 0.008333334
    %v1761 = vadd.f32 %v1753, 0.008333334
    %v1762 = vadd.f32 %v1754, 0.008333334
    %v1763 = vadd.f32 %v1755, 0.008333334
    %v1764 = vadd.f32 %v1756, 0.008333334
    %v1765 = vadd.f32 %v1757, 0.008333334
    %v1766 = vadd.f32 %v1758, 0.008333334
    %v1767 = vmul.f32 %v1759, %v1711
    %v1768 = vmul.f32 %v1760, %v1712
    %v1769 = vmul.f32 %v1761, %v1713
    %v1770 = vmul.f32 %v1762, %v1714
    %v1771 = vmul.f32 %v1763, %v1715
    %v1772 = vmul.f32 %v1764, %v1716
    %v1773 = vmul.f32 %v1765, %v1717
    %v1774 = vmul.f32 %v1766, %v1718
    %v1775 = vadd.f32 %v1767, -0.16666667
    %v1776 = vadd.f32 %v1768, -0.16666667
    %v1777 = vadd.f32 %v1769, -0.16666667
    %v1778 = vadd.f32 %v1770, -0.16666667
    %v1779 = vadd.f32 %v1771, -0.16666667
    %v1780 = vadd.f32 %v1772, -0.16666667
    %v1781 = vadd.f32 %v1773, -0.16666667
    %v1782 = vadd.f32 %v1774, -0.16666667
    %v1783 = vmul.f32 %v1711, %v1775
    %v1784 = vmul.f32 %v1712, %v1776
    %v1785 = vmul.f32 %v1713, %v1777
    %v1786 = vmul.f32 %v1714, %v1778
    %v1787 = vmul.f32 %v1715, %v1779
    %v1788 = vmul.f32 %v1716, %v1780
    %v1789 = vmul.f32 %v1717, %v1781
    %v1790 = vmul.f32 %v1718, %v1782
    %v1791 = vmul.f32 %v1703, %v1783
    %v1792 = vmul.f32 %v1704, %v1784
    %v1793 = vmul.f32 %v1705, %v1785
    %v1794 = vmul.f32 %v1706, %v1786
    %v1795 = vmul.f32 %v1707, %v1787
    %v1796 = vmul.f32 %v1708, %v1788
    %v1797 = vmul.f32 %v1709, %v1789
    %v1798 = vmul.f32 %v1710, %v1790
    %v1799 = vadd.f32 %v1703, %v1791
    %v1800 = vadd.f32 %v1704, %v1792
    %v1801 = vadd.f32 %v1705, %v1793
    %v1802 = vadd.f32 %v1706, %v1794
    %v1803 = vadd.f32 %v1707, %v1795
    %v1804 = vadd.f32 %v1708, %v1796
    %v1805 = vadd.f32 %v1709, %v1797
    %v1806 = vadd.f32 %v1710, %v1798
    %v1807 = vmul.f32 %v1655, 0.5
    %v1808 = vmul.f32 %v1656, 0.5
    %v1809 = vmul.f32 %v1657, 0.5
    %v1810 = vmul.f32 %v1658, 0.5
    %v1811 = vmul.f32 %v1659, 0.5
    %v1812 = vmul.f32 %v1660, 0.5
    %v1813 = vmul.f32 %v1661, 0.5
    %v1814 = vmul.f32 %v1662, 0.5
    %v1815 = vfloor.f32 %v1807
    %v1816 = vfloor.f32 %v1808
    %v1817 = vfloor.f32 %v1809
    %v1818 = vfloor.f32 %v1810
    %v1819 = vfloor.f32 %v1811
    %v1820 = vfloor.f32 %v1812
    %v1821 = vfloor.f32 %v1813
    %v1822 = vfloor.f32 %v1814
    %v1823 = vsub.f32 %v1807, %v1815
    %v1824 = vsub.f32 %v1808, %v1816
    %v1825 = vsub.f32 %v1809, %v1817
    %v1826 = vsub.f32 %v1810, %v1818
    %v1827 = vsub.f32 %v1811, %v1819
    %v1828 = vsub.f32 %v1812, %v1820
    %v1829 = vsub.f32 %v1813, %v1821
    %v1830 = vsub.f32 %v1814, %v1822
    %v1831 = vmul.f32 %v1823, 4.0
    %v1832 = vmul.f32 %v1824, 4.0
    %v1833 = vmul.f32 %v1825, 4.0
    %v1834 = vmul.f32 %v1826, 4.0
    %v1835 = vmul.f32 %v1827, 4.0
    %v1836 = vmul.f32 %v1828, 4.0
    %v1837 = vmul.f32 %v1829, 4.0
    %v1838 = vmul.f32 %v1830, 4.0
    %v1839 = vsub.f32 1.0, %v1831
    %v1840 = vsub.f32 1.0, %v1832
    %v1841 = vsub.f32 1.0, %v1833
    %v1842 = vsub.f32 1.0, %v1834
    %v1843 = vsub.f32 1.0, %v1835
    %v1844 = vsub.f32 1.0, %v1836
    %v1845 = vsub.f32 1.0, %v1837
    %v1846 = vsub.f32 1.0, %v1838
    %v1847 = vmul.f32 %v1799, %v1839
    %v1848 = vmul.f32 %v1800, %v1840
    %v1849 = vmul.f32 %v1801, %v1841
    %v1850 = vmul.f32 %v1802, %v1842
    %v1851 = vmul.f32 %v1803, %v1843
    %v1852 = vmul.f32 %v1804, %v1844
    %v1853 = vmul.f32 %v1805, %v1845
    %v1854 = vmul.f32 %v1806, %v1846
    %v1855 = vmul.f32 %v1847, %v1581
    %v1856 = vmul.f32 %v1848, %v1582
    %v1857 = vmul.f32 %v1849, %v1583
    %v1858 = vmul.f32 %v1850, %v1584
    %v1859 = vmul.f32 %v1851, %v1585
    %v1860 = vmul.f32 %v1852, %v1586
    %v1861 = vmul.f32 %v1853, %v1587
    %v1862 = vmul.f32 %v1854, %v1588
    %1863 = vst [vmem:[#allocation8] sm:$0xff] %v1855
    %1864 = vst [vmem:[#allocation8 + $0x8] sm:$0xff] %v1856
    %1865 = vst [vmem:[#allocation8 + $0x10] sm:$0xff] %v1857
    %1866 = vst [vmem:[#allocation8 + $0x18] sm:$0xff] %v1858
    %1867 = vst [vmem:[#allocation8 + $0x20] sm:$0xff] %v1859
    %1868 = vst [vmem:[#allocation8 + $0x28] sm:$0xff] %v1860
    %1869 = vst [vmem:[#allocation8 + $0x30] sm:$0xff] %v1861
    %1870 = vst [vmem:[#allocation8 + $0x38] sm:$0xff] %v1862
    // Predicated region
    $region26: #{tpu_custom_call.1} parent=1 // pred_check
      _
    $region27: #{tpu_custom_call.1} parent=1 // pred_check_branch
      %1872 = sbr.rel (0) target = $region29
    $region28: #{tpu_custom_call.1} parent=1 // pred_region
      %s1874 = ssub.s32 1024, 1024
      %1875 = vsyncadd [#allocation4], %s1874
      %s1877 = sshll.u32 [#allocation8], 4
      %s1878 = int_to_ptr.vmem [resolvable:$true] %s1877
      %1880 = dma.vmem_to_hbm [thread:$0]  %s1878, 1024, %s3, [#allocation4]
    $region29: #{tpu_custom_call.1} parent=1 // pred_fallthru
      _
    // Predicated region
    $region30: #{tpu_custom_call.1} parent=1 // pred_check
      _
    $region31: #{tpu_custom_call.1} parent=1 // pred_check_branch
      %1882 = sbr.rel (0) target = $region33
    $region32: #{tpu_custom_call.1} parent=1 // pred_region
      %1883 = dma.done [#allocation4], 1024
    $region33: #{tpu_custom_call.1} parent=1 // pred_fallthru
      _
    %1884 = vsyncpa [#allocation3], 1
    %1885 = vsyncpa [#allocation6], 1
    %1886 = vsyncpa [#allocation4], 1

</llo_original>
